<compile_context>
chip_gen: v7x
topology: tpu7x:2x2x1
jax: 0.10.0
libtpu: 0.0.40
codegen_flags: <defaults>
</compile_context>

<pallas_src>
import functools

import jax
import jax.numpy as jnp
from jax.experimental import pallas as pl
from jax.experimental.pallas import tpu as pltpu


_VMEM_LIMIT = 48 * 1024 * 1024   # explicit scoped-VMEM budget, safe on v5e/v6e/v7x


def _round_up(x, m):
    return ((x + m - 1) // m) * m


# ----------------------------------------------------------------------------
# Kernel 1: single-K-step matmul + folded BN scale/bias (+ residual) (+ ReLU)
# ----------------------------------------------------------------------------
def _make_matmul_kernel(has_residual, do_relu):
    def kernel(a_ref, w_ref, scale_ref, bias_ref, *rest):
        if has_residual:
            res_ref, o_ref = rest
        else:
            (o_ref,) = rest
        out = jnp.dot(a_ref[...], w_ref[...], preferred_element_type=jnp.float32)
        out = out * scale_ref[...] + bias_ref[...]
        if has_residual:
            out = out + res_ref[...].astype(jnp.float32)
        if do_relu:
            out = jnp.maximum(out, 0.0)
        o_ref[...] = out.astype(o_ref.dtype)
    return kernel


def _choose_tiles(m, np_eff):
    """M / N tile sizes.  Tiny-M layers collapse to a single 16-aligned M tile;
    the N tile is split so the grid keeps >=2 parallel steps when possible
    (both v7x TensorCores get work)."""
    if m <= 1024:
        tm = _round_up(m, 16)
    else:
        tm = 128
        for t in (512, 256, 128):
            if m % t == 0:
                tm = t
                break
    m_tiles = pl.cdiv(max(m, tm), tm)

    tn = np_eff
    for t in (512, 256):
        if np_eff % t == 0:
            tn = t
            break
    if m_tiles == 1 and tn == np_eff and np_eff % 256 == 0:
        tn = np_eff // 2
    return tm, tn


def fused_matmul_bn(a, w, scale, bias, residual=None, relu=True,
                    out_dtype=jnp.bfloat16):
    """a:(M,K) bf16 @ w:(K,Np) bf16 + f32 scale/bias [+residual] [relu] -> (M,Np) bf16.

    Single K step (full-K blocks) -> no accumulator scratch and no init/finalize
    branches; K and Np are 128-aligned by parameter prep."""
    m, k = a.shape
    k2, np_eff = w.shape
    assert k == k2 and k % 128 == 0 and np_eff % 128 == 0, (a.shape, w.shape)

    tm, tn = _choose_tiles(m, np_eff)
    mp = m
    if tm > m:                                   # tiny-M layers only
        mp = tm
        a = jnp.pad(a, ((0, mp - m), (0, 0)))
        if residual is not None:
            residual = jnp.pad(residual, ((0, mp - m), (0, 0)))
    grid = (pl.cdiv(mp, tm), np_eff // tn)

    args = [a, w, scale, bias]
    in_specs = [
        pl.BlockSpec((tm, k), lambda i, j: (i, 0)),
        pl.BlockSpec((k, tn), lambda i, j: (0, j)),
        pl.BlockSpec((1, tn), lambda i, j: (0, j)),
        pl.BlockSpec((1, tn), lambda i, j: (0, j)),
    ]
    if residual is not None:
        args.append(residual)
        in_specs.append(pl.BlockSpec((tm, tn), lambda i, j: (i, j)))

    out = pl.pallas_call(
        _make_matmul_kernel(residual is not None, relu),
        out_shape=jax.ShapeDtypeStruct((mp, np_eff), out_dtype),
        grid_spec=pltpu.PrefetchScalarGridSpec(
            num_scalar_prefetch=0,
            grid=grid,
            in_specs=in_specs,
            out_specs=pl.BlockSpec((tm, tn), lambda i, j: (i, j)),
        ),
        compiler_params=pltpu.CompilerParams(
            dimension_semantics=("parallel", "parallel"),
            vmem_limit_bytes=_VMEM_LIMIT,
        ),
    )(*args)

    if mp > m:
        out = out[:m]
    return out


# ----------------------------------------------------------------------------
# Kernel 2: fused 3x3 / stride-1 / pad-1 conv + BN (+ReLU), im2col fused in-kernel
# ----------------------------------------------------------------------------
def _make_conv3x3_kernel(wp, m_pad, do_relu):
    def kernel(x_ref, w_ref, scale_ref, bias_ref, o_ref):
        # x_ref: (1, L, Cin)  flattened padded image (row length = wp)
        # w_ref: (9, Cin, Cout); o_ref: (1, m_pad, Cout)
        acc = None
        for di in range(3):
            for dj in range(3):
                off = di * wp + dj                       # static offsets
                a = x_ref[0, off:off + m_pad, :]
                part = jnp.dot(a, w_ref[di * 3 + dj],
                               preferred_element_type=jnp.float32)
                acc = part if acc is None else acc + part
        out = acc * scale_ref[...] + bias_ref[...]
        if do_relu:
            out = jnp.maximum(out, 0.0)
        o_ref[0] = out.astype(o_ref.dtype)
    return kernel


def conv3x3_s1_bn(x, p, relu=True):
    """3x3 conv, stride 1, padding 1, + folded BN (+ReLU), NHWC bf16.

    The zero-padded image is flattened to (rows*Wp, C) so every one of the 9
    kernel taps is a contiguous row-shifted slice; the taps are accumulated
    inside a single Pallas kernel (no im2col patch matrix in HBM).  Garbage
    columns at the padded width are sliced off afterwards."""
    n, h, w, c = x.shape
    assert c == p["cin_eff"] and c % 128 == 0 and p["kh"] == 3 and p["kw"] == 3
    cout_eff = p["cout_eff"]
    wp = w + 2
    m_f = h * wp
    m_pad = _round_up(m_f, 16)
    rows = max(-(-(2 * wp + 2 + m_pad) // wp), h + 2)   # padded rows incl. halo
    xp = jnp.pad(x, ((0, 0), (1, rows - (h + 1)), (1, 1), (0, 0)))
    l = rows * wp
    xf = xp.reshape(n, l, c)

    out = pl.pallas_call(
        _make_conv3x3_kernel(wp, m_pad, relu),
        out_shape=jax.ShapeDtypeStruct((n, m_pad, cout_eff), jnp.bfloat16),
        grid_spec=pltpu.PrefetchScalarGridSpec(
            num_scalar_prefetch=0,
            grid=(n,),
            in_specs=[
                pl.BlockSpec((1, l, c), lambda b: (b, 0, 0)),
                pl.BlockSpec((9, c, cout_eff), lambda b: (0, 0, 0)),
                pl.BlockSpec((1, cout_eff), lambda b: (0, 0)),
                pl.BlockSpec((1, cout_eff), lambda b: (0, 0)),
            ],
            out_specs=pl.BlockSpec((1, m_pad, cout_eff), lambda b: (b, 0, 0)),
        ),
        compiler_params=pltpu.CompilerParams(
            dimension_semantics=("parallel",),
            vmem_limit_bytes=_VMEM_LIMIT,
        ),
    )(xf, p["w_taps"], p["scale"], p["bias"])

    if m_pad != m_f:
        out = out[:, :m_f, :]
    return out.reshape(n, h, wp, cout_eff)[:, :, :w, :]


# ----------------------------------------------------------------------------
# Kernel 3: MaxPool2d(kernel_size=3, stride=2, padding=1) on NHWC
# ----------------------------------------------------------------------------
def _maxpool_kernel(ee_ref, eo_ref, oe_ref, oo_ref, o_ref):
    # out[p,q] = max over padded-input rows {2p,2p+1,2p+2} x cols {2q,2q+1,2q+2}.
    # ee/eo/oe/oo are (even/odd row) x (even/odd col) parity views, so every
    # term is a unit-shifted slice -- no 9x HBM duplication.
    ho, wo = o_ref.shape[1], o_ref.shape[2]
    mx = jnp.maximum
    r = ee_ref[0, :ho, :wo]
    r = mx(r, eo_ref[0, :ho, :wo])
    r = mx(r, ee_ref[0, :ho, 1:wo + 1])
    r = mx(r, oe_ref[0, :ho, :wo])
    r = mx(r, oo_ref[0, :ho, :wo])
    r = mx(r, oe_ref[0, :ho, 1:wo + 1])
    r = mx(r, ee_ref[0, 1:ho + 1, :wo])
    r = mx(r, eo_ref[0, 1:ho + 1, :wo])
    r = mx(r, ee_ref[0, 1:ho + 1, 1:wo + 1])
    o_ref[0] = r


def maxpool_3x3_s2_p1(x):
    """PyTorch MaxPool2d(kernel_size=3, stride=2, padding=1) on NHWC bf16."""
    n, h, w, c = x.shape
    neg = float(jnp.finfo(x.dtype).min)
    xp = jnp.pad(x, ((0, 0), (1, 1), (1, 1), (0, 0)), constant_values=neg)
    ho = (h - 1) // 2 + 1
    wo = (w - 1) // 2 + 1
    parts = [xp[:, 0::2, 0::2, :], xp[:, 0::2, 1::2, :],
             xp[:, 1::2, 0::2, :], xp[:, 1::2, 1::2, :]]
    in_specs = [pl.BlockSpec((1,) + p.shape[1:], lambda b: (b, 0, 0, 0))
                for p in parts]
    return pl.pallas_call(
        _maxpool_kernel,
        out_shape=jax.ShapeDtypeStruct((n, ho, wo, c), x.dtype),
        grid_spec=pltpu.PrefetchScalarGridSpec(
            num_scalar_prefetch=0,
            grid=(n,),
            in_specs=in_specs,
            out_specs=pl.BlockSpec((1, ho, wo, c), lambda b: (b, 0, 0, 0)),
        ),
        compiler_params=pltpu.CompilerParams(dimension_semantics=("parallel",)),
    )(*parts)


# ----------------------------------------------------------------------------
# Conv wrappers + ResNet-50 structure (activations carried with 128-aligned C)
# ----------------------------------------------------------------------------
def conv1x1_bn(x, p, stride=1, residual=None, relu=True):
    """1x1 conv + BN (+residual) (+ReLU); no im2col, just pixel flattening."""
    if stride != 1:
        x = x[:, ::stride, ::stride, :]
    n, h, w, c = x.shape
    assert c == p["cin_eff"]
    r = (residual.reshape(n * h * w, residual.shape[-1])
         if residual is not None else None)
    out = fused_matmul_bn(x.reshape(n * h * w, c), p["w_mat"], p["scale"],
                          p["bias"], residual=r, relu=relu)
    return out.reshape(n, h, w, p["cout_eff"])


def conv_im2col_bn(x, p, stride, padding, relu=True):
    """General conv via im2col + fused matmul.  Only used for the 7x7 stride-2
    stem and the three stride-2 3x3 convs (small patch matrices); all stride-1
    3x3 convs go through the fused conv3x3 kernel instead."""
    n, h, w, c = x.shape
    kh, kw, kp = p["kh"], p["kw"], p["kp"]
    xp = (jnp.pad(x, ((0, 0), (padding, padding), (padding, padding), (0, 0)))
          if padding else x)
    ho = (h + 2 * padding - kh) // stride + 1
    wo = (w + 2 * padding - kw) // stride + 1
    cols = []
    for i in range(kh):
        for j in range(kw):
            cols.append(xp[:, i:i + (ho - 1) * stride + 1:stride,
                           j:j + (wo - 1) * stride + 1:stride, :])
    k = kh * kw * c
    if kp > k:
        cols.append(jnp.zeros((n, ho, wo, kp - k), x.dtype))
    a = jnp.concatenate(cols, axis=-1).reshape(n * ho * wo, kp)
    out = fused_matmul_bn(a, p["w_mat"], p["scale"], p["bias"], relu=relu)
    return out.reshape(n, ho, wo, p["cout_eff"])


def bottleneck_forward(x, p, stride):
    out = conv1x1_bn(x, p["conv1"], relu=True)
    if stride == 1:
        out = conv3x3_s1_bn(out, p["conv2"], relu=True)
    else:
        out = conv_im2col_bn(out, p["conv2"], stride=stride, padding=1, relu=True)
    if "downsample" in p:
        identity = conv1x1_bn(x, p["downsample"], stride=stride, relu=False)
    else:
        identity = x
    out = conv1x1_bn(out, p["conv3"], residual=identity, relu=True)
    return out


def resnet50_forward(params, x_nchw):
    x = jnp.transpose(x_nchw, (0, 2, 3, 1)).astype(jnp.bfloat16)  # NCHW -> NHWC bf16
    x = conv_im2col_bn(x, params["stem"], stride=2, padding=3, relu=True)
    x = maxpool_3x3_s2_p1(x)            # stem kept at 128 (zero-padded) channels

    outs = []
    for name, stride in (("layer1", 1), ("layer2", 2), ("layer3", 2), ("layer4", 2)):
        for bi, bp in enumerate(params[name]):
            x = bottleneck_forward(x, bp, stride if bi == 0 else 1)
        outs.append(jnp.transpose(x, (0, 3, 1, 2)).astype(jnp.float32))  # NCHW f32
    return outs


# ----------------------------------------------------------------------------
# One-time parameter preparation: fold BN, transpose / channel-pad / bf16-cast
# weights.  Activation channels stay 128-aligned across the whole net, so no
# runtime channel padding or slicing is needed.
# ----------------------------------------------------------------------------
def _prep_conv_bn(p, *, fuse3x3=False, pad_cin=True):
    w = p["w"]                                   # (Cout, Cin, kh, kw) torch layout
    cout, cin, kh, kw = w.shape
    cout_eff = _round_up(cout, 128)
    cin_eff = _round_up(cin, 128) if pad_cin else cin
    scale = jnp.pad(p["scale"].astype(jnp.float32),
                    (0, cout_eff - cout)).reshape(1, cout_eff)
    bias = jnp.pad(p["bias"].astype(jnp.float32),
                   (0, cout_eff - cout)).reshape(1, cout_eff)
    wt = jnp.transpose(w, (2, 3, 1, 0))          # (kh, kw, cin, cout)
    wt = jnp.pad(wt, ((0, 0), (0, 0), (0, cin_eff - cin), (0, cout_eff - cout)))
    d = dict(kh=kh, kw=kw, cin=cin, cout=cout, cin_eff=cin_eff, cout_eff=cout_eff,
             scale=scale, bias=bias)
    if fuse3x3:
        d["w_taps"] = wt.reshape(kh * kw, cin_eff, cout_eff).astype(jnp.bfloat16)
    else:
        k = kh * kw * cin_eff
        kp = _round_up(k, 128)
        w_mat = wt.reshape(k, cout_eff)
        if kp > k:
            w_mat = jnp.pad(w_mat, ((0, kp - k), (0, 0)))
        d["w_mat"] = w_mat.astype(jnp.bfloat16)
        d["kp"] = kp
    return d


def prepare_params(params):
    out = {"stem": _prep_conv_bn(params["stem"], pad_cin=False)}
    for name, first_stride in (("layer1", 1), ("layer2", 2),
                               ("layer3", 2), ("layer4", 2)):
        blocks = []
        for bi, bp in enumerate(params[name]):
            s = first_stride if bi == 0 else 1
            d = {"conv1": _prep_conv_bn(bp["conv1"]),
                 "conv2": _prep_conv_bn(bp["conv2"], fuse3x3=(s == 1)),
                 "conv3": _prep_conv_bn(bp["conv3"])}
            if "downsample" in bp:
                d["downsample"] = _prep_conv_bn(bp["downsample"])
            blocks.append(d)
        out[name] = blocks
    return out


# ----------------------------------------------------------------------------
# Deterministic synthetic parameters (same shapes as torchvision resnet50)
# ----------------------------------------------------------------------------
def _make_conv_bn_params(key, cin, cout, k):
    k1, k2, k3, k4, k5 = jax.random.split(key, 5)
    fan_in = cin * k * k
    w = jax.random.normal(k1, (cout, cin, k, k), jnp.float32) * jnp.sqrt(2.0 / fan_in)
    gamma = jax.random.uniform(k2, (cout,), minval=0.9, maxval=1.1)
    beta = jax.random.normal(k3, (cout,)) * 0.01
    mean = jax.random.normal(k4, (cout,)) * 0.01
    var = jax.random.uniform(k5, (cout,), minval=0.9, maxval=1.1)
    scale = gamma / jnp.sqrt(var + 1e-5)          # eval-mode BN folded
    bias = beta - mean * scale
    return {"w": w, "scale": scale, "bias": bias}


def _make_bottleneck_params(key, inplanes, planes, downsample):
    ks = jax.random.split(key, 4)
    p = {
        "conv1": _make_conv_bn_params(ks[0], inplanes, planes, 1),
        "conv2": _make_conv_bn_params(ks[1], planes, planes, 3),
        "conv3": _make_conv_bn_params(ks[2], planes, planes * 4, 1),
    }
    if downsample:
        p["downsample"] = _make_conv_bn_params(ks[3], inplanes, planes * 4, 1)
    return p


def _make_layer_params(key, inplanes, planes, blocks):
    ks = jax.random.split(key, blocks)
    params = [_make_bottleneck_params(ks[0], inplanes, planes, True)]
    for b in range(1, blocks):
        params.append(_make_bottleneck_params(ks[b], planes * 4, planes, False))
    return params


def make_resnet50_params(key):
    ks = jax.random.split(key, 5)
    return {
        "stem": _make_conv_bn_params(ks[0], 3, 64, 7),
        "layer1": _make_layer_params(ks[1], 64, 64, 3),
        "layer2": _make_layer_params(ks[2], 256, 128, 4),
        "layer3": _make_layer_params(ks[3], 512, 256, 6),
        "layer4": _make_layer_params(ks[4], 1024, 512, 3),
    }


# ----------------------------------------------------------------------------
# Unit checks for the two non-standard kernels (loose tolerances for bf16)
# ----------------------------------------------------------------------------
def _check_conv3x3(key):
    k1, k2, k3, k4 = jax.random.split(key, 4)
    cin, cout, h, w = 64, 64, 8, 8
    raw = {"w": jax.random.normal(k1, (cout, cin, 3, 3), jnp.float32) * 0.05,
           "scale": jax.random.uniform(k2, (cout,), minval=0.5, maxval=1.5),
           "bias": jax.random.normal(k3, (cout,)) * 0.1}
    p = _prep_conv_bn(raw, fuse3x3=True)
    x = jax.random.normal(k4, (1, h, w, cin), jnp.float32).astype(jnp.bfloat16)
    x_pad = jnp.pad(x, ((0, 0), (0, 0), (0, 0), (0, p["cin_eff"] - cin)))
    got = conv3x3_s1_bn(x_pad, p, relu=True).astype(jnp.float32)

    w_bf = raw["w"].astype(jnp.bfloat16).astype(jnp.float32)
    ref = jax.lax.conv_general_dilated(
        x.astype(jnp.float32), jnp.transpose(w_bf, (2, 3, 1, 0)),
        window_strides=(1, 1), padding=((1, 1), (1, 1)),
        dimension_numbers=("NHWC", "HWIO", "NHWC"))
    ref = jnp.maximum(ref * raw["scale"] + raw["bias"], 0.0)
    assert bool(jnp.allclose(got[..., :cout], ref, atol=5e-2, rtol=5e-2)), \
        "conv3x3 kernel mismatch"


def _check_maxpool(key):
    x = jax.random.normal(key, (2, 9, 9, 128), jnp.float32).astype(jnp.bfloat16)
    got = maxpool_3x3_s2_p1(x).astype(jnp.float32)
    ref = jax.lax.reduce_window(
        x.astype(jnp.float32), -jnp.inf, jax.lax.max,
        (1, 3, 3, 1), (1, 2, 2, 1), [(0, 0), (1, 1), (1, 1), (0, 0)])
    assert bool(jnp.array_equal(got, ref)), "maxpool kernel mismatch"


# ----------------------------------------------------------------------------
if __name__ == "__main__":
    key = jax.random.PRNGKey(0)
    pkey, xkey, tkey = jax.random.split(key, 3)

    # quick correctness checks of the fused conv3x3 and maxpool kernels
    _check_conv3x3(tkey)
    _check_maxpool(tkey)

    params = make_resnet50_params(pkey)   # torch-layout synthetic parameters
    prepped = prepare_params(params)      # one-time weight transpose/pad/bf16

    # Small NCHW input (ResNet-50 stem expects 3 input channels).
    x = jax.random.normal(xkey, (2, 3, 32, 32), jnp.float32)

    fwd = jax.jit(functools.partial(resnet50_forward, prepped))
    outs = jax.block_until_ready(fwd(x))

    expected = [(2, 256, 8, 8), (2, 512, 4, 4), (2, 1024, 2, 2), (2, 2048, 1, 1)]
    assert [tuple(o.shape) for o in outs] == expected, [o.shape for o in outs]
    assert all(bool(jnp.isfinite(o).all()) for o in outs)

    print("KERNEL_OK")
</pallas_src>

<mosaic_0001>
module attributes {stable_mosaic.version = 11 : i64} {
  func.func @kernel(%arg0: i32, %arg1: memref<1x110x128xbf16, #tpu.memory_space<vmem>>, %arg2: memref<9x128x128xbf16, #tpu.memory_space<vmem>>, %arg3: memref<1x128xf32, #tpu.memory_space<vmem>>, %arg4: memref<1x128xf32, #tpu.memory_space<vmem>>, %arg5: memref<1x80x128xbf16, #tpu.memory_space<vmem>>) attributes {dimension_semantics = [#tpu.dimension_semantics<parallel>], iteration_bounds = array<i64: 1>, scalar_prefetch = 0 : i64, scratch_operands = 0 : i64, tpu.core_type = #tpu.core_type<tc>, window_params = [{transform_indices = @transform_0, window_bounds = array<i64: 1, 110, 128>}, {pipeline_mode = #tpu.pipeline_mode<synchronous>, transform_indices = @transform_1, window_bounds = array<i64: 9, 128, 128>}, {pipeline_mode = #tpu.pipeline_mode<synchronous>, transform_indices = @transform_2, window_bounds = array<i64: 1, 128>}, {pipeline_mode = #tpu.pipeline_mode<synchronous>, transform_indices = @transform_3, window_bounds = array<i64: 1, 128>}, {transform_indices = @transform_4, window_bounds = array<i64: 1, 80, 128>}]} {
    %c0 = arith.constant 0 : index
    %c0_0 = arith.constant 0 : index
    %c0_1 = arith.constant 0 : index
    %0 = vector.load %arg1[%c0, %c0_0, %c0_1] : memref<1x110x128xbf16, #tpu.memory_space<vmem>>, vector<1x80x128xbf16>
    %1 = vector.shape_cast %0 : vector<1x80x128xbf16> to vector<80x128xbf16>
    %c0_2 = arith.constant 0 : index
    %c0_3 = arith.constant 0 : index
    %c0_4 = arith.constant 0 : index
    %2 = vector.load %arg2[%c0_2, %c0_3, %c0_4] : memref<9x128x128xbf16, #tpu.memory_space<vmem>>, vector<1x128x128xbf16>
    %3 = vector.shape_cast %2 : vector<1x128x128xbf16> to vector<128x128xbf16>
    %cst = arith.constant dense<0.000000e+00> : vector<80x128xf32>
    %4 = tpu.matmul %1, %3, %cst {dimension_numbers = #tpu.dot_dimension_numbers<[1], [0], [0], [1], [0, 0, 1, 1], [], []>} : vector<80x128xbf16>, vector<128x128xbf16>, vector<80x128xf32> -> vector<80x128xf32>
    %c0_5 = arith.constant 0 : index
    %c1 = arith.constant 1 : index
    %c0_6 = arith.constant 0 : index
    %5 = vector.load %arg1[%c0_5, %c1, %c0_6] : memref<1x110x128xbf16, #tpu.memory_space<vmem>>, vector<1x80x128xbf16>
    %6 = vector.shape_cast %5 : vector<1x80x128xbf16> to vector<80x128xbf16>
    %c1_7 = arith.constant 1 : index
    %c0_8 = arith.constant 0 : index
    %c0_9 = arith.constant 0 : index
    %7 = vector.load %arg2[%c1_7, %c0_8, %c0_9] : memref<9x128x128xbf16, #tpu.memory_space<vmem>>, vector<1x128x128xbf16>
    %8 = vector.shape_cast %7 : vector<1x128x128xbf16> to vector<128x128xbf16>
    %cst_10 = arith.constant dense<0.000000e+00> : vector<80x128xf32>
    %9 = tpu.matmul %6, %8, %cst_10 {dimension_numbers = #tpu.dot_dimension_numbers<[1], [0], [0], [1], [0, 0, 1, 1], [], []>} : vector<80x128xbf16>, vector<128x128xbf16>, vector<80x128xf32> -> vector<80x128xf32>
    %10 = arith.addf %4, %9 : vector<80x128xf32>
    %c0_11 = arith.constant 0 : index
    %c2 = arith.constant 2 : index
    %c0_12 = arith.constant 0 : index
    %11 = vector.load %arg1[%c0_11, %c2, %c0_12] : memref<1x110x128xbf16, #tpu.memory_space<vmem>>, vector<1x80x128xbf16>
    %12 = vector.shape_cast %11 : vector<1x80x128xbf16> to vector<80x128xbf16>
    %c2_13 = arith.constant 2 : index
    %c0_14 = arith.constant 0 : index
    %c0_15 = arith.constant 0 : index
    %13 = vector.load %arg2[%c2_13, %c0_14, %c0_15] : memref<9x128x128xbf16, #tpu.memory_space<vmem>>, vector<1x128x128xbf16>
    %14 = vector.shape_cast %13 : vector<1x128x128xbf16> to vector<128x128xbf16>
    %cst_16 = arith.constant dense<0.000000e+00> : vector<80x128xf32>
    %15 = tpu.matmul %12, %14, %cst_16 {dimension_numbers = #tpu.dot_dimension_numbers<[1], [0], [0], [1], [0, 0, 1, 1], [], []>} : vector<80x128xbf16>, vector<128x128xbf16>, vector<80x128xf32> -> vector<80x128xf32>
    %16 = arith.addf %10, %15 : vector<80x128xf32>
    %c0_17 = arith.constant 0 : index
    %c10 = arith.constant 10 : index
    %c0_18 = arith.constant 0 : index
    %17 = vector.load %arg1[%c0_17, %c10, %c0_18] : memref<1x110x128xbf16, #tpu.memory_space<vmem>>, vector<1x80x128xbf16>
    %18 = vector.shape_cast %17 : vector<1x80x128xbf16> to vector<80x128xbf16>
    %c3 = arith.constant 3 : index
    %c0_19 = arith.constant 0 : index
    %c0_20 = arith.constant 0 : index
    %19 = vector.load %arg2[%c3, %c0_19, %c0_20] : memref<9x128x128xbf16, #tpu.memory_space<vmem>>, vector<1x128x128xbf16>
    %20 = vector.shape_cast %19 : vector<1x128x128xbf16> to vector<128x128xbf16>
    %cst_21 = arith.constant dense<0.000000e+00> : vector<80x128xf32>
    %21 = tpu.matmul %18, %20, %cst_21 {dimension_numbers = #tpu.dot_dimension_numbers<[1], [0], [0], [1], [0, 0, 1, 1], [], []>} : vector<80x128xbf16>, vector<128x128xbf16>, vector<80x128xf32> -> vector<80x128xf32>
    %22 = arith.addf %16, %21 : vector<80x128xf32>
    %c0_22 = arith.constant 0 : index
    %c11 = arith.constant 11 : index
    %c0_23 = arith.constant 0 : index
    %23 = vector.load %arg1[%c0_22, %c11, %c0_23] : memref<1x110x128xbf16, #tpu.memory_space<vmem>>, vector<1x80x128xbf16>
    %24 = vector.shape_cast %23 : vector<1x80x128xbf16> to vector<80x128xbf16>
    %c4 = arith.constant 4 : index
    %c0_24 = arith.constant 0 : index
    %c0_25 = arith.constant 0 : index
    %25 = vector.load %arg2[%c4, %c0_24, %c0_25] : memref<9x128x128xbf16, #tpu.memory_space<vmem>>, vector<1x128x128xbf16>
    %26 = vector.shape_cast %25 : vector<1x128x128xbf16> to vector<128x128xbf16>
    %cst_26 = arith.constant dense<0.000000e+00> : vector<80x128xf32>
    %27 = tpu.matmul %24, %26, %cst_26 {dimension_numbers = #tpu.dot_dimension_numbers<[1], [0], [0], [1], [0, 0, 1, 1], [], []>} : vector<80x128xbf16>, vector<128x128xbf16>, vector<80x128xf32> -> vector<80x128xf32>
    %28 = arith.addf %22, %27 : vector<80x128xf32>
    %c0_27 = arith.constant 0 : index
    %c12 = arith.constant 12 : index
    %c0_28 = arith.constant 0 : index
    %29 = vector.load %arg1[%c0_27, %c12, %c0_28] : memref<1x110x128xbf16, #tpu.memory_space<vmem>>, vector<1x80x128xbf16>
    %30 = vector.shape_cast %29 : vector<1x80x128xbf16> to vector<80x128xbf16>
    %c5 = arith.constant 5 : index
    %c0_29 = arith.constant 0 : index
    %c0_30 = arith.constant 0 : index
    %31 = vector.load %arg2[%c5, %c0_29, %c0_30] : memref<9x128x128xbf16, #tpu.memory_space<vmem>>, vector<1x128x128xbf16>
    %32 = vector.shape_cast %31 : vector<1x128x128xbf16> to vector<128x128xbf16>
    %cst_31 = arith.constant dense<0.000000e+00> : vector<80x128xf32>
    %33 = tpu.matmul %30, %32, %cst_31 {dimension_numbers = #tpu.dot_dimension_numbers<[1], [0], [0], [1], [0, 0, 1, 1], [], []>} : vector<80x128xbf16>, vector<128x128xbf16>, vector<80x128xf32> -> vector<80x128xf32>
    %34 = arith.addf %28, %33 : vector<80x128xf32>
    %c0_32 = arith.constant 0 : index
    %c20 = arith.constant 20 : index
    %c0_33 = arith.constant 0 : index
    %35 = vector.load %arg1[%c0_32, %c20, %c0_33] : memref<1x110x128xbf16, #tpu.memory_space<vmem>>, vector<1x80x128xbf16>
    %36 = vector.shape_cast %35 : vector<1x80x128xbf16> to vector<80x128xbf16>
    %c6 = arith.constant 6 : index
    %c0_34 = arith.constant 0 : index
    %c0_35 = arith.constant 0 : index
    %37 = vector.load %arg2[%c6, %c0_34, %c0_35] : memref<9x128x128xbf16, #tpu.memory_space<vmem>>, vector<1x128x128xbf16>
    %38 = vector.shape_cast %37 : vector<1x128x128xbf16> to vector<128x128xbf16>
    %cst_36 = arith.constant dense<0.000000e+00> : vector<80x128xf32>
    %39 = tpu.matmul %36, %38, %cst_36 {dimension_numbers = #tpu.dot_dimension_numbers<[1], [0], [0], [1], [0, 0, 1, 1], [], []>} : vector<80x128xbf16>, vector<128x128xbf16>, vector<80x128xf32> -> vector<80x128xf32>
    %40 = arith.addf %34, %39 : vector<80x128xf32>
    %c0_37 = arith.constant 0 : index
    %c21 = arith.constant 21 : index
    %c0_38 = arith.constant 0 : index
    %41 = vector.load %arg1[%c0_37, %c21, %c0_38] : memref<1x110x128xbf16, #tpu.memory_space<vmem>>, vector<1x80x128xbf16>
    %42 = vector.shape_cast %41 : vector<1x80x128xbf16> to vector<80x128xbf16>
    %c7 = arith.constant 7 : index
    %c0_39 = arith.constant 0 : index
    %c0_40 = arith.constant 0 : index
    %43 = vector.load %arg2[%c7, %c0_39, %c0_40] : memref<9x128x128xbf16, #tpu.memory_space<vmem>>, vector<1x128x128xbf16>
    %44 = vector.shape_cast %43 : vector<1x128x128xbf16> to vector<128x128xbf16>
    %cst_41 = arith.constant dense<0.000000e+00> : vector<80x128xf32>
    %45 = tpu.matmul %42, %44, %cst_41 {dimension_numbers = #tpu.dot_dimension_numbers<[1], [0], [0], [1], [0, 0, 1, 1], [], []>} : vector<80x128xbf16>, vector<128x128xbf16>, vector<80x128xf32> -> vector<80x128xf32>
    %46 = arith.addf %40, %45 : vector<80x128xf32>
    %c0_42 = arith.constant 0 : index
    %c22 = arith.constant 22 : index
    %c0_43 = arith.constant 0 : index
    %47 = vector.load %arg1[%c0_42, %c22, %c0_43] : memref<1x110x128xbf16, #tpu.memory_space<vmem>>, vector<1x80x128xbf16>
    %48 = vector.shape_cast %47 : vector<1x80x128xbf16> to vector<80x128xbf16>
    %c8 = arith.constant 8 : index
    %c0_44 = arith.constant 0 : index
    %c0_45 = arith.constant 0 : index
    %49 = vector.load %arg2[%c8, %c0_44, %c0_45] : memref<9x128x128xbf16, #tpu.memory_space<vmem>>, vector<1x128x128xbf16>
    %50 = vector.shape_cast %49 : vector<1x128x128xbf16> to vector<128x128xbf16>
    %cst_46 = arith.constant dense<0.000000e+00> : vector<80x128xf32>
    %51 = tpu.matmul %48, %50, %cst_46 {dimension_numbers = #tpu.dot_dimension_numbers<[1], [0], [0], [1], [0, 0, 1, 1], [], []>} : vector<80x128xbf16>, vector<128x128xbf16>, vector<80x128xf32> -> vector<80x128xf32>
    %52 = arith.addf %46, %51 : vector<80x128xf32>
    %c0_47 = arith.constant 0 : index
    %c0_48 = arith.constant 0 : index
    %53 = vector.load %arg3[%c0_47, %c0_48] : memref<1x128xf32, #tpu.memory_space<vmem>>, vector<1x128xf32>
    %54 = vector.broadcast %53 : vector<1x128xf32> to vector<80x128xf32>
    %55 = arith.mulf %52, %54 : vector<80x128xf32>
    %c0_49 = arith.constant 0 : index
    %c0_50 = arith.constant 0 : index
    %56 = vector.load %arg4[%c0_49, %c0_50] : memref<1x128xf32, #tpu.memory_space<vmem>>, vector<1x128xf32>
    %57 = vector.broadcast %56 : vector<1x128xf32> to vector<80x128xf32>
    %58 = arith.addf %55, %57 : vector<80x128xf32>
    %cst_51 = arith.constant 0.000000e+00 : f32
    %59 = vector.broadcast %cst_51 : f32 to vector<80x128xf32>
    %60 = arith.maximumf %58, %59 : vector<80x128xf32>
    %61 = arith.truncf %60 : vector<80x128xf32> to vector<80x128xbf16>
    %c0_52 = arith.constant 0 : index
    %c0_53 = arith.constant 0 : index
    %c0_54 = arith.constant 0 : index
    %62 = vector.load %arg5[%c0_52, %c0_53, %c0_54] : memref<1x80x128xbf16, #tpu.memory_space<vmem>>, vector<1x80x128xbf16>
    %63 = vector.shape_cast %62 : vector<1x80x128xbf16> to vector<80x128xbf16>
    %64 = vector.shape_cast %61 : vector<80x128xbf16> to vector<1x80x128xbf16>
    tpu.vector_store %arg5[%c0_52, %c0_53, %c0_54], %64 {strides = array<i32>} : memref<1x80x128xbf16, #tpu.memory_space<vmem>>, vector<1x80x128xbf16>,
    return
  }
  func.func @transform_0(%arg0: i32) -> (i32, i32, i32) {
    %c0_i32 = arith.constant 0 : i32
    %c0_i32_0 = arith.constant 0 : i32
    %c0_i32_1 = arith.constant 0 : i32
    return %arg0, %c0_i32, %c0_i32_0 : i32, i32, i32
  }
  func.func @transform_1(%arg0: i32) -> (i32, i32, i32) {
    %c0_i32 = arith.constant 0 : i32
    %c0_i32_0 = arith.constant 0 : i32
    %c0_i32_1 = arith.constant 0 : i32
    %c0_i32_2 = arith.constant 0 : i32
    return %c0_i32, %c0_i32_0, %c0_i32_1 : i32, i32, i32
  }
  func.func @transform_2(%arg0: i32) -> (i32, i32) {
    %c0_i32 = arith.constant 0 : i32
    %c0_i32_0 = arith.constant 0 : i32
    %c0_i32_1 = arith.constant 0 : i32
    return %c0_i32, %c0_i32_0 : i32, i32
  }
  func.func @transform_3(%arg0: i32) -> (i32, i32) {
    %c0_i32 = arith.constant 0 : i32
    %c0_i32_0 = arith.constant 0 : i32
    %c0_i32_1 = arith.constant 0 : i32
    return %c0_i32, %c0_i32_0 : i32, i32
  }
  func.func @transform_4(%arg0: i32) -> (i32, i32, i32) {
    %c0_i32 = arith.constant 0 : i32
    %c0_i32_0 = arith.constant 0 : i32
    %c0_i32_1 = arith.constant 0 : i32
    return %arg0, %c0_i32, %c0_i32_0 : i32, i32, i32
  }
}

</mosaic_0001>

<llo_original>
// kernel: tpu_custom_call.1
$region0: #{tpu_custom_call.1}
  #allocation0 [shape = 'u32[]', space=smem, size = 0x4, offset = 0x4, fixed_abs, tag = 'smem constant byte address 0x4 - core index']
  #allocation1 [shape = 'u32[144,128]{1,0:T(1,128)}', space=vmem, size = 0x12000, scoped, tag = 'internal scratch']
  %s0 = inlined_call_operand.hbm [shape: bf16[1,110,128], index: 0, kind: input, shape index: {}]
  %s1 = inlined_call_operand.hbm [shape: bf16[9,128,128], index: 1, kind: input, shape index: {}]
  %s2 = inlined_call_operand.vmem [shape: f32[1,128], index: 2, kind: input, shape index: {}]
  %s3 = inlined_call_operand.vmem [shape: f32[1,128], index: 3, kind: input, shape index: {}]
  %s4 = inlined_call_operand.hbm [shape: bf16[1,80,128], index: 4, kind: output, shape index: {}]
  %s5 = sld [smem:[#allocation0]]
  $region34: #{tpu_custom_call.1} parent=0
    _
  %s7 = ssub.s32 1, %s5
  %s8 = scalar_select 0, %s7, %s5
  $region1: #{tpu_custom_call.1} parent=0
    #allocation2 [shape = 'u8[28672]{0}', space=vmem, size = 0x7000, scoped, tag = 'input window, operand 0, single buffered']
    #allocation3 [shape = 's32[1]{0}', space=sflag, size = 0x4, scoped, tag = 'scoped memory for tpu_custom_call.1']
    #allocation4 [shape = 's32[1]{0}', space=sflag, size = 0x4, scoped, tag = 'scoped memory for tpu_custom_call.1']
    #allocation5 [shape = 'u8[294912]{0}', space=vmem, size = 0x48000, scoped, tag = 'input window, operand 1, single buffered']
    #allocation6 [shape = 's32[1]{0}', space=sflag, size = 0x4, scoped, tag = 'scoped memory for tpu_custom_call.1']
    #allocation7 [shape = 'u8[20480]{0}', space=vmem, size = 0x5000, scoped, tag = 'output window, operand 0, single buffered']
    %9 = vsyncpa [#allocation3], 0
    %10 = vsyncpa [#allocation6], 0
    %11 = vsyncpa [#allocation4], 0
    // Predicated region
    $region2: #{tpu_custom_call.1} parent=1 // pred_check
      _
    $region3: #{tpu_custom_call.1} parent=1 // pred_check_branch
      %13 = sbr.rel (0) target = $region5
    $region4: #{tpu_custom_call.1} parent=1 // pred_region
      %s15 = ssub.s32 896, 896
      %16 = vsyncadd [#allocation3], %s15
      %s17 = sshll.u32 [#allocation2], 4
      %s18 = int_to_ptr.vmem [resolvable:$true] %s17
      %23 = dma.hbm_to_vmem [thread:$0]  %s0, 896, %s18, [#allocation3], 64, 64, 4
    $region5: #{tpu_custom_call.1} parent=1 // pred_fallthru
      _
    // Predicated region
    $region6: #{tpu_custom_call.1} parent=1 // pred_check
      _
    $region7: #{tpu_custom_call.1} parent=1 // pred_check_branch
      %25 = sbr.rel (0) target = $region9
    $region8: #{tpu_custom_call.1} parent=1 // pred_region
      %s27 = ssub.s32 9216, 9216
      %28 = vsyncadd [#allocation6], %s27
      %s29 = sshll.u32 [#allocation5], 4
      %s30 = int_to_ptr.vmem [resolvable:$true] %s29
      %35 = dma.hbm_to_vmem [thread:$0]  %s1, 9216, %s30, [#allocation6], 64, 64, 4
    $region9: #{tpu_custom_call.1} parent=1 // pred_fallthru
      _
    // Predicated region
    $region10: #{tpu_custom_call.1} parent=1 // pred_check
      _
    $region11: #{tpu_custom_call.1} parent=1 // pred_check_branch
      %37 = sbr.rel (0) target = $region13
    $region12: #{tpu_custom_call.1} parent=1 // pred_region
      _
    $region13: #{tpu_custom_call.1} parent=1 // pred_fallthru
      _
    // Predicated region
    $region14: #{tpu_custom_call.1} parent=1 // pred_check
      _
    $region15: #{tpu_custom_call.1} parent=1 // pred_check_branch
      %39 = sbr.rel (0) target = $region17
    $region16: #{tpu_custom_call.1} parent=1 // pred_region
      _
    $region17: #{tpu_custom_call.1} parent=1 // pred_fallthru
      _
    // Predicated region
    $region18: #{tpu_custom_call.1} parent=1 // pred_check
      _
    $region19: #{tpu_custom_call.1} parent=1 // pred_check_branch
      %41 = sbr.rel (0) target = $region21
    $region20: #{tpu_custom_call.1} parent=1 // pred_region
      %42 = dma.done [#allocation3], 896
    $region21: #{tpu_custom_call.1} parent=1 // pred_fallthru
      _
    // Predicated region
    $region22: #{tpu_custom_call.1} parent=1 // pred_check
      _
    $region23: #{tpu_custom_call.1} parent=1 // pred_check_branch
      %44 = sbr.rel (0) target = $region25
    $region24: #{tpu_custom_call.1} parent=1 // pred_region
      %45 = dma.done [#allocation6], 9216
    $region25: #{tpu_custom_call.1} parent=1 // pred_fallthru
      _
    %v47 = vld [vmem:[#allocation2] sm:$0xf]
    %v48 = vld [vmem:[#allocation2 + $0x4] sm:$0xf]
    %v49 = vld [vmem:[#allocation2 + $0x8] sm:$0xf]
    %v50 = vld [vmem:[#allocation2 + $0xc] sm:$0xf]
    %v51 = vld [vmem:[#allocation2 + $0x10] sm:$0xf]
    %v52 = vld [vmem:[#allocation2 + $0x14] sm:$0xf]
    %v53 = vld [vmem:[#allocation2 + $0x18] sm:$0xf]
    %v54 = vld [vmem:[#allocation2 + $0x1c] sm:$0xf]
    %v55 = vld [vmem:[#allocation2 + $0x20] sm:$0xf]
    %v56 = vld [vmem:[#allocation2 + $0x24] sm:$0xf]
    %v57 = vld [vmem:[#allocation5] sm:$0xf]
    %v58 = vld [vmem:[#allocation5 + $0x4] sm:$0xf]
    %v59 = vld [vmem:[#allocation5 + $0x8] sm:$0xf]
    %v60 = vld [vmem:[#allocation5 + $0xc] sm:$0xf]
    %v61 = vld [vmem:[#allocation5 + $0x10] sm:$0xf]
    %v62 = vld [vmem:[#allocation5 + $0x14] sm:$0xf]
    %v63 = vld [vmem:[#allocation5 + $0x18] sm:$0xf]
    %v64 = vld [vmem:[#allocation5 + $0x1c] sm:$0xf]
    %v65 = vld [vmem:[#allocation5 + $0x20] sm:$0xf]
    %v66 = vld [vmem:[#allocation5 + $0x24] sm:$0xf]
    %v67 = vld [vmem:[#allocation5 + $0x28] sm:$0xf]
    %v68 = vld [vmem:[#allocation5 + $0x2c] sm:$0xf]
    %v69 = vld [vmem:[#allocation5 + $0x30] sm:$0xf]
    %v70 = vld [vmem:[#allocation5 + $0x34] sm:$0xf]
    %v71 = vld [vmem:[#allocation5 + $0x38] sm:$0xf]
    %v72 = vld [vmem:[#allocation5 + $0x3c] sm:$0xf]
    %v73 = vld [vmem:[#allocation2 + $0x28] sm:$0x1]
    %s74 = scalar_lea.vmem [#allocation5], 64
    %v75 = vld [vmem:[%s74] sm:$0xf]
    %v76 = vld [vmem:[%s74 + $0x4] sm:$0xf]
    %v77 = vld [vmem:[%s74 + $0x8] sm:$0xf]
    %v78 = vld [vmem:[%s74 + $0xc] sm:$0xf]
    %v79 = vld [vmem:[%s74 + $0x10] sm:$0xf]
    %v80 = vld [vmem:[%s74 + $0x14] sm:$0xf]
    %v81 = vld [vmem:[%s74 + $0x18] sm:$0xf]
    %v82 = vld [vmem:[%s74 + $0x1c] sm:$0xf]
    %v83 = vld [vmem:[%s74 + $0x20] sm:$0xf]
    %v84 = vld [vmem:[%s74 + $0x24] sm:$0xf]
    %v85 = vld [vmem:[%s74 + $0x28] sm:$0xf]
    %v86 = vld [vmem:[%s74 + $0x2c] sm:$0xf]
    %v87 = vld [vmem:[%s74 + $0x30] sm:$0xf]
    %v88 = vld [vmem:[%s74 + $0x34] sm:$0xf]
    %v89 = vld [vmem:[%s74 + $0x38] sm:$0xf]
    %v90 = vld [vmem:[%s74 + $0x3c] sm:$0xf]
    %v102 = vunpack.c.l.b16 %v47
    %v103 = vunpack.c.l.b16 %v48
    %v104 = vunpack.c.l.b16 %v49
    %v105 = vunpack.c.l.b16 %v50
    %v106 = vunpack.c.l.b16 %v51
    %v107 = vunpack.c.l.b16 %v52
    %v108 = vunpack.c.l.b16 %v53
    %v109 = vunpack.c.l.b16 %v54
    %v110 = vunpack.c.l.b16 %v55
    %v111 = vunpack.c.l.b16 %v56
    %v112 = vunpack.c.l.b16 %v73
    %v113 = vpack.c.b16 %v103, %v102
    %v114 = vpack.c.b16 %v105, %v104
    %v115 = vpack.c.b16 %v107, %v106
    %v116 = vpack.c.b16 %v109, %v108
    %v117 = vpack.c.b16 %v111, %v110
    %v118 = vpack.c.b16 %v112, %v112
    %vm119 = vsmask.f32 7424
    %v121 = vshrl.u32 %v113, 16
    %v123 = vshll.u32 %v113, 16
    %v125 = vrot.slane %v123, 1
    %v126 = vor.u32 %v121, %v125
    %v128 = vshll.u32 %v114, 16
    %v130 = vrot.slane %v128, 1
    %v131 = vsel %vm119, %v126, %v130
    %v132 = vshrl.u32 %v114, 16
    %v134 = vor.u32 %v132, %v130
    %v136 = vshll.u32 %v115, 16
    %v138 = vrot.slane %v136, 1
    %v139 = vsel %vm119, %v134, %v138
    %v140 = vshrl.u32 %v115, 16
    %v142 = vor.u32 %v140, %v138
    %v144 = vshll.u32 %v116, 16
    %v146 = vrot.slane %v144, 1
    %v147 = vsel %vm119, %v142, %v146
    %v148 = vshrl.u32 %v116, 16
    %v150 = vor.u32 %v148, %v146
    %v152 = vshll.u32 %v117, 16
    %v154 = vrot.slane %v152, 1
    %v155 = vsel %vm119, %v150, %v154
    %v156 = vshrl.u32 %v117, 16
    %v158 = vor.u32 %v156, %v154
    %v160 = vshll.u32 %v118, 16
    %v162 = vrot.slane %v160, 1
    %v163 = vsel %vm119, %v158, %v162
    %v185 = vunpack.c.l.b16 %v75
    %v186 = vunpack.c.l.b16 %v76
    %v187 = vunpack.c.l.b16 %v77
    %v188 = vunpack.c.l.b16 %v78
    %v189 = vunpack.c.l.b16 %v79
    %v190 = vunpack.c.l.b16 %v80
    %v191 = vunpack.c.l.b16 %v81
    %v192 = vunpack.c.l.b16 %v82
    %v193 = vunpack.c.l.b16 %v83
    %v194 = vunpack.c.l.b16 %v84
    %v195 = vunpack.c.l.b16 %v85
    %v196 = vunpack.c.l.b16 %v86
    %v197 = vunpack.c.l.b16 %v87
    %v198 = vunpack.c.l.b16 %v88
    %v199 = vunpack.c.l.b16 %v89
    %v200 = vunpack.c.l.b16 %v90
    %v201 = vpack.c.b16 %v186, %v185
    %v202 = vpack.c.b16 %v188, %v187
    %v203 = vpack.c.b16 %v190, %v189
    %v204 = vpack.c.b16 %v192, %v191
    %v205 = vpack.c.b16 %v194, %v193
    %v206 = vpack.c.b16 %v196, %v195
    %v207 = vpack.c.b16 %v198, %v197
    %v208 = vpack.c.b16 %v200, %v199
    %217 = vmatprep.subr.bf16.mxu0 0
    %218 = vmatpush1.bf16.msra.mxu0 %v201
    %219 = vmatprep.subr.bf16.mxu0 0
    %220 = vmatpush1.bf16.msra.mxu0 %v202
    %221 = vmatprep.subr.bf16.mxu0 0
    %222 = vmatpush1.bf16.msra.mxu0 %v203
    %223 = vmatprep.subr.bf16.mxu0 0
    %224 = vmatpush1.bf16.msra.mxu0 %v204
    %225 = vmatprep.subr.bf16.mxu0 0
    %226 = vmatpush1.bf16.msra.mxu0 %v205
    %227 = vmatprep.subr.bf16.mxu0 0
    %228 = vmatpush1.bf16.msra.mxu0 %v206
    %229 = vmatprep.subr.bf16.mxu0 0
    %230 = vmatpush1.bf16.msra.mxu0 %v207
    %231 = vmatprep.subr.bf16.mxu0 0
    %232 = vmatpush1.bf16.msra.mxu0 %v208
    %233 = vmatprep.subr.bf16.mxu0 0
    %234 = vmatpush1.bf16.msra.mxu0 0
    %235 = vmatprep.subr.bf16.mxu0 0
    %236 = vmatpush1.bf16.msra.mxu0 0
    %237 = vmatprep.subr.bf16.mxu0 0
    %238 = vmatpush1.bf16.msra.mxu0 0
    %239 = vmatprep.subr.bf16.mxu0 0
    %240 = vmatpush1.bf16.msra.mxu0 0
    %241 = vmatprep.subr.bf16.mxu0 0
    %242 = vmatpush1.bf16.msra.mxu0 0
    %243 = vmatprep.subr.bf16.mxu0 0
    %244 = vmatpush1.bf16.msra.mxu0 0
    %245 = vmatprep.subr.bf16.mxu0 0
    %246 = vmatpush1.bf16.msra.mxu0 0
    %247 = vmatprep.subr.bf16.mxu0 0
    %248 = vmatpush1.bf16.msra.mxu0 0
    %249 = vmatprep.mubr.bf16.mxu0 0
    %250 = vmatmul.mubr.bf16.gmra.mrb[0].mxu0 %v131
    %v251 = vpop.f32.mrb[0].mxu0
    %v252 = vadd.f32 0.0, %v251
    %v253 = vpop.f32.mrb[0].mxu0
    %v254 = vpop.f32.mrb[0].mxu0
    %v255 = vadd.f32 0.0, %v254
    %v256 = vpop.f32.mrb[0].mxu0
    %257 = vmatprep.mubr.bf16.mxu0 0
    %258 = vmatmul.mubr.bf16.gmra.mrb[0].mxu0 %v139
    %v259 = vpop.f32.mrb[0].mxu0
    %v260 = vadd.f32 0.0, %v259
    %v261 = vpop.f32.mrb[0].mxu0
    %v262 = vpop.f32.mrb[0].mxu0
    %v263 = vadd.f32 0.0, %v262
    %v264 = vpop.f32.mrb[0].mxu0
    %265 = vmatprep.mubr.bf16.mxu0 0
    %266 = vmatmul.mubr.bf16.gmra.mrb[0].mxu0 %v147
    %v267 = vpop.f32.mrb[0].mxu0
    %v268 = vadd.f32 0.0, %v267
    %v269 = vpop.f32.mrb[0].mxu0
    %v270 = vpop.f32.mrb[0].mxu0
    %v271 = vadd.f32 0.0, %v270
    %v272 = vpop.f32.mrb[0].mxu0
    %273 = vmatprep.mubr.bf16.mxu0 0
    %274 = vmatmul.mubr.bf16.gmra.mrb[0].mxu0 %v155
    %v275 = vpop.f32.mrb[0].mxu0
    %v276 = vadd.f32 0.0, %v275
    %v277 = vpop.f32.mrb[0].mxu0
    %v278 = vpop.f32.mrb[0].mxu0
    %v279 = vadd.f32 0.0, %v278
    %v280 = vpop.f32.mrb[0].mxu0
    %281 = vmatprep.mubr.bf16.mxu0 0
    %282 = vmatmul.mubr.bf16.gmra.mrb[0].mxu0 %v163
    %v283 = vpop.f32.mrb[0].mxu0
    %v284 = vadd.f32 0.0, %v283
    %v285 = vpop.f32.mrb[0].mxu0
    %v286 = vpop.f32.mrb[0].mxu0
    %v287 = vadd.f32 0.0, %v286
    %v288 = vpop.f32.mrb[0].mxu0
    %289 = vdwg.mxu0
    %v311 = vunpack.c.l.b16 %v57
    %v312 = vunpack.c.l.b16 %v58
    %v313 = vunpack.c.l.b16 %v59
    %v314 = vunpack.c.l.b16 %v60
    %v315 = vunpack.c.l.b16 %v61
    %v316 = vunpack.c.l.b16 %v62
    %v317 = vunpack.c.l.b16 %v63
    %v318 = vunpack.c.l.b16 %v64
    %v319 = vunpack.c.l.b16 %v65
    %v320 = vunpack.c.l.b16 %v66
    %v321 = vunpack.c.l.b16 %v67
    %v322 = vunpack.c.l.b16 %v68
    %v323 = vunpack.c.l.b16 %v69
    %v324 = vunpack.c.l.b16 %v70
    %v325 = vunpack.c.l.b16 %v71
    %v326 = vunpack.c.l.b16 %v72
    %v327 = vpack.c.b16 %v312, %v311
    %v328 = vpack.c.b16 %v314, %v313
    %v329 = vpack.c.b16 %v316, %v315
    %v330 = vpack.c.b16 %v318, %v317
    %v331 = vpack.c.b16 %v320, %v319
    %v332 = vpack.c.b16 %v322, %v321
    %v333 = vpack.c.b16 %v324, %v323
    %v334 = vpack.c.b16 %v326, %v325
    %343 = vmatprep.subr.bf16.mxu0 0
    %344 = vmatpush1.bf16.msra.mxu0 %v327
    %345 = vmatprep.subr.bf16.mxu0 0
    %346 = vmatpush1.bf16.msra.mxu0 %v328
    %347 = vmatprep.subr.bf16.mxu0 0
    %348 = vmatpush1.bf16.msra.mxu0 %v329
    %349 = vmatprep.subr.bf16.mxu0 0
    %350 = vmatpush1.bf16.msra.mxu0 %v330
    %351 = vmatprep.subr.bf16.mxu0 0
    %352 = vmatpush1.bf16.msra.mxu0 %v331
    %353 = vmatprep.subr.bf16.mxu0 0
    %354 = vmatpush1.bf16.msra.mxu0 %v332
    %355 = vmatprep.subr.bf16.mxu0 0
    %356 = vmatpush1.bf16.msra.mxu0 %v333
    %357 = vmatprep.subr.bf16.mxu0 0
    %358 = vmatpush1.bf16.msra.mxu0 %v334
    %359 = vmatprep.subr.bf16.mxu0 0
    %360 = vmatpush1.bf16.msra.mxu0 0
    %361 = vmatprep.subr.bf16.mxu0 0
    %362 = vmatpush1.bf16.msra.mxu0 0
    %363 = vmatprep.subr.bf16.mxu0 0
    %364 = vmatpush1.bf16.msra.mxu0 0
    %365 = vmatprep.subr.bf16.mxu0 0
    %366 = vmatpush1.bf16.msra.mxu0 0
    %367 = vmatprep.subr.bf16.mxu0 0
    %368 = vmatpush1.bf16.msra.mxu0 0
    %369 = vmatprep.subr.bf16.mxu0 0
    %370 = vmatpush1.bf16.msra.mxu0 0
    %371 = vmatprep.subr.bf16.mxu0 0
    %372 = vmatpush1.bf16.msra.mxu0 0
    %373 = vmatprep.subr.bf16.mxu0 0
    %374 = vmatpush1.bf16.msra.mxu0 0
    %375 = vmatprep.mubr.bf16.mxu0 0
    %376 = vmatmul.mubr.bf16.gmra.mrb[0].mxu0 %v113
    %v377 = vpop.f32.mrb[0].mxu0
    %v378 = vadd.f32 %v252, %v377
    %v379 = vpop.f32.mrb[0].mxu0
    %v380 = vpop.f32.mrb[0].mxu0
    %v381 = vadd.f32 %v255, %v380
    %v382 = vpop.f32.mrb[0].mxu0
    %383 = vmatprep.mubr.bf16.mxu0 0
    %384 = vmatmul.mubr.bf16.gmra.mrb[0].mxu0 %v114
    %v385 = vpop.f32.mrb[0].mxu0
    %v386 = vadd.f32 %v260, %v385
    %v387 = vpop.f32.mrb[0].mxu0
    %v388 = vpop.f32.mrb[0].mxu0
    %v389 = vadd.f32 %v263, %v388
    %v390 = vpop.f32.mrb[0].mxu0
    %391 = vmatprep.mubr.bf16.mxu0 0
    %392 = vmatmul.mubr.bf16.gmra.mrb[0].mxu0 %v115
    %v393 = vpop.f32.mrb[0].mxu0
    %v394 = vadd.f32 %v268, %v393
    %v395 = vpop.f32.mrb[0].mxu0
    %v396 = vpop.f32.mrb[0].mxu0
    %v397 = vadd.f32 %v271, %v396
    %v398 = vpop.f32.mrb[0].mxu0
    %399 = vmatprep.mubr.bf16.mxu0 0
    %400 = vmatmul.mubr.bf16.gmra.mrb[0].mxu0 %v116
    %v401 = vpop.f32.mrb[0].mxu0
    %v402 = vadd.f32 %v276, %v401
    %v403 = vpop.f32.mrb[0].mxu0
    %v404 = vpop.f32.mrb[0].mxu0
    %v405 = vadd.f32 %v279, %v404
    %v406 = vpop.f32.mrb[0].mxu0
    %407 = vmatprep.mubr.bf16.mxu0 0
    %408 = vmatmul.mubr.bf16.gmra.mrb[0].mxu0 %v117
    %v409 = vpop.f32.mrb[0].mxu0
    %v410 = vadd.f32 %v284, %v409
    %v411 = vpop.f32.mrb[0].mxu0
    %v412 = vpop.f32.mrb[0].mxu0
    %v413 = vadd.f32 %v287, %v412
    %v414 = vpop.f32.mrb[0].mxu0
    %415 = vdwg.mxu0
    %v416 = vld [vmem:[#allocation2] sm:$0xe]
    %s417 = scalar_lea.vmem [#allocation5], 128
    %v418 = vld [vmem:[%s417] sm:$0xf]
    %v419 = vld [vmem:[%s417 + $0x4] sm:$0xf]
    %v420 = vld [vmem:[%s417 + $0x8] sm:$0xf]
    %v421 = vld [vmem:[%s417 + $0xc] sm:$0xf]
    %v422 = vld [vmem:[%s417 + $0x10] sm:$0xf]
    %v423 = vld [vmem:[%s417 + $0x14] sm:$0xf]
    %v424 = vld [vmem:[%s417 + $0x18] sm:$0xf]
    %v425 = vld [vmem:[%s417 + $0x1c] sm:$0xf]
    %v426 = vld [vmem:[%s417 + $0x20] sm:$0xf]
    %v427 = vld [vmem:[%s417 + $0x24] sm:$0xf]
    %v428 = vld [vmem:[%s417 + $0x28] sm:$0xf]
    %v429 = vld [vmem:[%s417 + $0x2c] sm:$0xf]
    %v430 = vld [vmem:[%s417 + $0x30] sm:$0xf]
    %v431 = vld [vmem:[%s417 + $0x34] sm:$0xf]
    %v432 = vld [vmem:[%s417 + $0x38] sm:$0xf]
    %v433 = vld [vmem:[%s417 + $0x3c] sm:$0xf]
    %v435 = vunpack.c.l.b16 %v416
    %v436 = vpack.c.b16 %v103, %v435
    %vm437 = vcmask 1046528
    %v438 = vrot.slane %v436, 1
    %v439 = vrot.slane %v114, 1
    %v440 = vsel %vm437, %v438, %v439
    %v441 = vrot.slane %v115, 1
    %v442 = vsel %vm437, %v439, %v441
    %v443 = vrot.slane %v116, 1
    %v444 = vsel %vm437, %v441, %v443
    %v445 = vrot.slane %v117, 1
    %v446 = vsel %vm437, %v443, %v445
    %v447 = vrot.slane %v118, 1
    %v448 = vsel %vm437, %v445, %v447
    %v470 = vunpack.c.l.b16 %v418
    %v471 = vunpack.c.l.b16 %v419
    %v472 = vunpack.c.l.b16 %v420
    %v473 = vunpack.c.l.b16 %v421
    %v474 = vunpack.c.l.b16 %v422
    %v475 = vunpack.c.l.b16 %v423
    %v476 = vunpack.c.l.b16 %v424
    %v477 = vunpack.c.l.b16 %v425
    %v478 = vunpack.c.l.b16 %v426
    %v479 = vunpack.c.l.b16 %v427
    %v480 = vunpack.c.l.b16 %v428
    %v481 = vunpack.c.l.b16 %v429
    %v482 = vunpack.c.l.b16 %v430
    %v483 = vunpack.c.l.b16 %v431
    %v484 = vunpack.c.l.b16 %v432
    %v485 = vunpack.c.l.b16 %v433
    %v486 = vpack.c.b16 %v471, %v470
    %v487 = vpack.c.b16 %v473, %v472
    %v488 = vpack.c.b16 %v475, %v474
    %v489 = vpack.c.b16 %v477, %v476
    %v490 = vpack.c.b16 %v479, %v478
    %v491 = vpack.c.b16 %v481, %v480
    %v492 = vpack.c.b16 %v483, %v482
    %v493 = vpack.c.b16 %v485, %v484
    %502 = vmatprep.subr.bf16.mxu0 0
    %503 = vmatpush1.bf16.msra.mxu0 %v486
    %504 = vmatprep.subr.bf16.mxu0 0
    %505 = vmatpush1.bf16.msra.mxu0 %v487
    %506 = vmatprep.subr.bf16.mxu0 0
    %507 = vmatpush1.bf16.msra.mxu0 %v488
    %508 = vmatprep.subr.bf16.mxu0 0
    %509 = vmatpush1.bf16.msra.mxu0 %v489
    %510 = vmatprep.subr.bf16.mxu0 0
    %511 = vmatpush1.bf16.msra.mxu0 %v490
    %512 = vmatprep.subr.bf16.mxu0 0
    %513 = vmatpush1.bf16.msra.mxu0 %v491
    %514 = vmatprep.subr.bf16.mxu0 0
    %515 = vmatpush1.bf16.msra.mxu0 %v492
    %516 = vmatprep.subr.bf16.mxu0 0
    %517 = vmatpush1.bf16.msra.mxu0 %v493
    %518 = vmatprep.subr.bf16.mxu0 0
    %519 = vmatpush1.bf16.msra.mxu0 0
    %520 = vmatprep.subr.bf16.mxu0 0
    %521 = vmatpush1.bf16.msra.mxu0 0
    %522 = vmatprep.subr.bf16.mxu0 0
    %523 = vmatpush1.bf16.msra.mxu0 0
    %524 = vmatprep.subr.bf16.mxu0 0
    %525 = vmatpush1.bf16.msra.mxu0 0
    %526 = vmatprep.subr.bf16.mxu0 0
    %527 = vmatpush1.bf16.msra.mxu0 0
    %528 = vmatprep.subr.bf16.mxu0 0
    %529 = vmatpush1.bf16.msra.mxu0 0
    %530 = vmatprep.subr.bf16.mxu0 0
    %531 = vmatpush1.bf16.msra.mxu0 0
    %532 = vmatprep.subr.bf16.mxu0 0
    %533 = vmatpush1.bf16.msra.mxu0 0
    %534 = vmatprep.mubr.bf16.mxu0 0
    %535 = vmatmul.mubr.bf16.gmra.mrb[0].mxu0 %v440
    %v536 = vpop.f32.mrb[0].mxu0
    %v537 = vadd.f32 0.0, %v536
    %v538 = vpop.f32.mrb[0].mxu0
    %v539 = vpop.f32.mrb[0].mxu0
    %v540 = vadd.f32 0.0, %v539
    %v541 = vpop.f32.mrb[0].mxu0
    %542 = vmatprep.mubr.bf16.mxu0 0
    %543 = vmatmul.mubr.bf16.gmra.mrb[0].mxu0 %v442
    %v544 = vpop.f32.mrb[0].mxu0
    %v545 = vadd.f32 0.0, %v544
    %v546 = vpop.f32.mrb[0].mxu0
    %v547 = vpop.f32.mrb[0].mxu0
    %v548 = vadd.f32 0.0, %v547
    %v549 = vpop.f32.mrb[0].mxu0
    %550 = vmatprep.mubr.bf16.mxu0 0
    %551 = vmatmul.mubr.bf16.gmra.mrb[0].mxu0 %v444
    %v552 = vpop.f32.mrb[0].mxu0
    %v553 = vadd.f32 0.0, %v552
    %v554 = vpop.f32.mrb[0].mxu0
    %v555 = vpop.f32.mrb[0].mxu0
    %v556 = vadd.f32 0.0, %v555
    %v557 = vpop.f32.mrb[0].mxu0
    %558 = vmatprep.mubr.bf16.mxu0 0
    %559 = vmatmul.mubr.bf16.gmra.mrb[0].mxu0 %v446
    %v560 = vpop.f32.mrb[0].mxu0
    %v561 = vadd.f32 0.0, %v560
    %v562 = vpop.f32.mrb[0].mxu0
    %v563 = vpop.f32.mrb[0].mxu0
    %v564 = vadd.f32 0.0, %v563
    %v565 = vpop.f32.mrb[0].mxu0
    %566 = vmatprep.mubr.bf16.mxu0 0
    %567 = vmatmul.mubr.bf16.gmra.mrb[0].mxu0 %v448
    %v568 = vpop.f32.mrb[0].mxu0
    %v569 = vadd.f32 0.0, %v568
    %v570 = vpop.f32.mrb[0].mxu0
    %v571 = vpop.f32.mrb[0].mxu0
    %v572 = vadd.f32 0.0, %v571
    %v573 = vpop.f32.mrb[0].mxu0
    %574 = vdwg.mxu0
    %v575 = vadd.f32 %v378, %v537
    %v576 = vadd.f32 %v381, %v540
    %v577 = vadd.f32 %v386, %v545
    %v578 = vadd.f32 %v389, %v548
    %v579 = vadd.f32 %v394, %v553
    %v580 = vadd.f32 %v397, %v556
    %v581 = vadd.f32 %v402, %v561
    %v582 = vadd.f32 %v405, %v564
    %v583 = vadd.f32 %v410, %v569
    %v584 = vadd.f32 %v413, %v572
    %v585 = vld [vmem:[#allocation2 + $0x4] sm:$0xe]
    %v586 = vld [vmem:[#allocation2 + $0x8] sm:$0xf]
    %v587 = vld [vmem:[#allocation2 + $0xc] sm:$0xf]
    %v588 = vld [vmem:[#allocation2 + $0x10] sm:$0xf]
    %v589 = vld [vmem:[#allocation2 + $0x14] sm:$0xf]
    %v590 = vld [vmem:[#allocation2 + $0x18] sm:$0xf]
    %v591 = vld [vmem:[#allocation2 + $0x1c] sm:$0xf]
    %v592 = vld [vmem:[#allocation2 + $0x20] sm:$0xf]
    %v593 = vld [vmem:[#allocation2 + $0x24] sm:$0xf]
    %v594 = vld [vmem:[#allocation2 + $0x28] sm:$0xf]
    %v595 = vld [vmem:[#allocation2 + $0x2c] sm:$0x1]
    %s596 = scalar_lea.vmem [#allocation5], 192
    %v597 = vld [vmem:[%s596] sm:$0xf]
    %v598 = vld [vmem:[%s596 + $0x4] sm:$0xf]
    %v599 = vld [vmem:[%s596 + $0x8] sm:$0xf]
    %v600 = vld [vmem:[%s596 + $0xc] sm:$0xf]
    %v601 = vld [vmem:[%s596 + $0x10] sm:$0xf]
    %v602 = vld [vmem:[%s596 + $0x14] sm:$0xf]
    %v603 = vld [vmem:[%s596 + $0x18] sm:$0xf]
    %v604 = vld [vmem:[%s596 + $0x1c] sm:$0xf]
    %v605 = vld [vmem:[%s596 + $0x20] sm:$0xf]
    %v606 = vld [vmem:[%s596 + $0x24] sm:$0xf]
    %v607 = vld [vmem:[%s596 + $0x28] sm:$0xf]
    %v608 = vld [vmem:[%s596 + $0x2c] sm:$0xf]
    %v609 = vld [vmem:[%s596 + $0x30] sm:$0xf]
    %v610 = vld [vmem:[%s596 + $0x34] sm:$0xf]
    %v611 = vld [vmem:[%s596 + $0x38] sm:$0xf]
    %v612 = vld [vmem:[%s596 + $0x3c] sm:$0xf]
    %v624 = vunpack.c.l.b16 %v585
    %v625 = vunpack.c.l.b16 %v586
    %v626 = vunpack.c.l.b16 %v587
    %v627 = vunpack.c.l.b16 %v588
    %v628 = vunpack.c.l.b16 %v589
    %v629 = vunpack.c.l.b16 %v590
    %v630 = vunpack.c.l.b16 %v591
    %v631 = vunpack.c.l.b16 %v592
    %v632 = vunpack.c.l.b16 %v593
    %v633 = vunpack.c.l.b16 %v594
    %v634 = vunpack.c.l.b16 %v595
    %v635 = vpack.c.b16 %v625, %v624
    %v636 = vpack.c.b16 %v627, %v626
    %v637 = vpack.c.b16 %v629, %v628
    %v638 = vpack.c.b16 %v631, %v630
    %v639 = vpack.c.b16 %v633, %v632
    %v640 = vpack.c.b16 %v634, %v634
    %v641 = vrot.slane %v635, 1
    %v642 = vrot.slane %v636, 1
    %v643 = vsel %vm437, %v641, %v642
    %v644 = vrot.slane %v637, 1
    %v645 = vsel %vm437, %v642, %v644
    %v646 = vrot.slane %v638, 1
    %v647 = vsel %vm437, %v644, %v646
    %v648 = vrot.slane %v639, 1
    %v649 = vsel %vm437, %v646, %v648
    %v650 = vrot.slane %v640, 1
    %v651 = vsel %vm437, %v648, %v650
    %v673 = vunpack.c.l.b16 %v597
    %v674 = vunpack.c.l.b16 %v598
    %v675 = vunpack.c.l.b16 %v599
    %v676 = vunpack.c.l.b16 %v600
    %v677 = vunpack.c.l.b16 %v601
    %v678 = vunpack.c.l.b16 %v602
    %v679 = vunpack.c.l.b16 %v603
    %v680 = vunpack.c.l.b16 %v604
    %v681 = vunpack.c.l.b16 %v605
    %v682 = vunpack.c.l.b16 %v606
    %v683 = vunpack.c.l.b16 %v607
    %v684 = vunpack.c.l.b16 %v608
    %v685 = vunpack.c.l.b16 %v609
    %v686 = vunpack.c.l.b16 %v610
    %v687 = vunpack.c.l.b16 %v611
    %v688 = vunpack.c.l.b16 %v612
    %v689 = vpack.c.b16 %v674, %v673
    %v690 = vpack.c.b16 %v676, %v675
    %v691 = vpack.c.b16 %v678, %v677
    %v692 = vpack.c.b16 %v680, %v679
    %v693 = vpack.c.b16 %v682, %v681
    %v694 = vpack.c.b16 %v684, %v683
    %v695 = vpack.c.b16 %v686, %v685
    %v696 = vpack.c.b16 %v688, %v687
    %705 = vmatprep.subr.bf16.mxu0 0
    %706 = vmatpush1.bf16.msra.mxu0 %v689
    %707 = vmatprep.subr.bf16.mxu0 0
    %708 = vmatpush1.bf16.msra.mxu0 %v690
    %709 = vmatprep.subr.bf16.mxu0 0
    %710 = vmatpush1.bf16.msra.mxu0 %v691
    %711 = vmatprep.subr.bf16.mxu0 0
    %712 = vmatpush1.bf16.msra.mxu0 %v692
    %713 = vmatprep.subr.bf16.mxu0 0
    %714 = vmatpush1.bf16.msra.mxu0 %v693
    %715 = vmatprep.subr.bf16.mxu0 0
    %716 = vmatpush1.bf16.msra.mxu0 %v694
    %717 = vmatprep.subr.bf16.mxu0 0
    %718 = vmatpush1.bf16.msra.mxu0 %v695
    %719 = vmatprep.subr.bf16.mxu0 0
    %720 = vmatpush1.bf16.msra.mxu0 %v696
    %721 = vmatprep.subr.bf16.mxu0 0
    %722 = vmatpush1.bf16.msra.mxu0 0
    %723 = vmatprep.subr.bf16.mxu0 0
    %724 = vmatpush1.bf16.msra.mxu0 0
    %725 = vmatprep.subr.bf16.mxu0 0
    %726 = vmatpush1.bf16.msra.mxu0 0
    %727 = vmatprep.subr.bf16.mxu0 0
    %728 = vmatpush1.bf16.msra.mxu0 0
    %729 = vmatprep.subr.bf16.mxu0 0
    %730 = vmatpush1.bf16.msra.mxu0 0
    %731 = vmatprep.subr.bf16.mxu0 0
    %732 = vmatpush1.bf16.msra.mxu0 0
    %733 = vmatprep.subr.bf16.mxu0 0
    %734 = vmatpush1.bf16.msra.mxu0 0
    %735 = vmatprep.subr.bf16.mxu0 0
    %736 = vmatpush1.bf16.msra.mxu0 0
    %737 = vmatprep.mubr.bf16.mxu0 0
    %738 = vmatmul.mubr.bf16.gmra.mrb[0].mxu0 %v643
    %v739 = vpop.f32.mrb[0].mxu0
    %v740 = vadd.f32 0.0, %v739
    %v741 = vpop.f32.mrb[0].mxu0
    %v742 = vpop.f32.mrb[0].mxu0
    %v743 = vadd.f32 0.0, %v742
    %v744 = vpop.f32.mrb[0].mxu0
    %745 = vmatprep.mubr.bf16.mxu0 0
    %746 = vmatmul.mubr.bf16.gmra.mrb[0].mxu0 %v645
    %v747 = vpop.f32.mrb[0].mxu0
    %v748 = vadd.f32 0.0, %v747
    %v749 = vpop.f32.mrb[0].mxu0
    %v750 = vpop.f32.mrb[0].mxu0
    %v751 = vadd.f32 0.0, %v750
    %v752 = vpop.f32.mrb[0].mxu0
    %753 = vmatprep.mubr.bf16.mxu0 0
    %754 = vmatmul.mubr.bf16.gmra.mrb[0].mxu0 %v647
    %v755 = vpop.f32.mrb[0].mxu0
    %v756 = vadd.f32 0.0, %v755
    %v757 = vpop.f32.mrb[0].mxu0
    %v758 = vpop.f32.mrb[0].mxu0
    %v759 = vadd.f32 0.0, %v758
    %v760 = vpop.f32.mrb[0].mxu0
    %761 = vmatprep.mubr.bf16.mxu0 0
    %762 = vmatmul.mubr.bf16.gmra.mrb[0].mxu0 %v649
    %v763 = vpop.f32.mrb[0].mxu0
    %v764 = vadd.f32 0.0, %v763
    %v765 = vpop.f32.mrb[0].mxu0
    %v766 = vpop.f32.mrb[0].mxu0
    %v767 = vadd.f32 0.0, %v766
    %v768 = vpop.f32.mrb[0].mxu0
    %769 = vmatprep.mubr.bf16.mxu0 0
    %770 = vmatmul.mubr.bf16.gmra.mrb[0].mxu0 %v651
    %v771 = vpop.f32.mrb[0].mxu0
    %v772 = vadd.f32 0.0, %v771
    %v773 = vpop.f32.mrb[0].mxu0
    %v774 = vpop.f32.mrb[0].mxu0
    %v775 = vadd.f32 0.0, %v774
    %v776 = vpop.f32.mrb[0].mxu0
    %777 = vdwg.mxu0
    %v778 = vadd.f32 %v575, %v740
    %v779 = vadd.f32 %v576, %v743
    %v780 = vadd.f32 %v577, %v748
    %v781 = vadd.f32 %v578, %v751
    %v782 = vadd.f32 %v579, %v756
    %v783 = vadd.f32 %v580, %v759
    %v784 = vadd.f32 %v581, %v764
    %v785 = vadd.f32 %v582, %v767
    %v786 = vadd.f32 %v583, %v772
    %v787 = vadd.f32 %v584, %v775
    %v788 = vld [vmem:[#allocation2 + $0x2c] sm:$0x3]
    %s789 = scalar_lea.vmem [#allocation5], 256
    %v790 = vld [vmem:[%s789] sm:$0xf]
    %v791 = vld [vmem:[%s789 + $0x4] sm:$0xf]
    %v792 = vld [vmem:[%s789 + $0x8] sm:$0xf]
    %v793 = vld [vmem:[%s789 + $0xc] sm:$0xf]
    %v794 = vld [vmem:[%s789 + $0x10] sm:$0xf]
    %v795 = vld [vmem:[%s789 + $0x14] sm:$0xf]
    %v796 = vld [vmem:[%s789 + $0x18] sm:$0xf]
    %v797 = vld [vmem:[%s789 + $0x1c] sm:$0xf]
    %v798 = vld [vmem:[%s789 + $0x20] sm:$0xf]
    %v799 = vld [vmem:[%s789 + $0x24] sm:$0xf]
    %v800 = vld [vmem:[%s789 + $0x28] sm:$0xf]
    %v801 = vld [vmem:[%s789 + $0x2c] sm:$0xf]
    %v802 = vld [vmem:[%s789 + $0x30] sm:$0xf]
    %v803 = vld [vmem:[%s789 + $0x34] sm:$0xf]
    %v804 = vld [vmem:[%s789 + $0x38] sm:$0xf]
    %v805 = vld [vmem:[%s789 + $0x3c] sm:$0xf]
    %v807 = vunpack.c.l.b16 %v788
    %v808 = vpack.c.b16 %v807, %v807
    %vm809 = vsmask.f32 6400
    %v811 = vshrl.u32 %v635, 16
    %v813 = vrot.slane %v811, 1
    %v814 = vshll.u32 %v635, 16
    %v816 = vrot.slane %v814, 2
    %v817 = vor.u32 %v813, %v816
    %v819 = vshrl.u32 %v636, 16
    %v821 = vrot.slane %v819, 1
    %v822 = vshll.u32 %v636, 16
    %v824 = vrot.slane %v822, 2
    %v825 = vor.u32 %v821, %v824
    %v826 = vsel %vm809, %v817, %v825
    %v828 = vshrl.u32 %v637, 16
    %v830 = vrot.slane %v828, 1
    %v831 = vshll.u32 %v637, 16
    %v833 = vrot.slane %v831, 2
    %v834 = vor.u32 %v830, %v833
    %v835 = vsel %vm809, %v825, %v834
    %v837 = vshrl.u32 %v638, 16
    %v839 = vrot.slane %v837, 1
    %v840 = vshll.u32 %v638, 16
    %v842 = vrot.slane %v840, 2
    %v843 = vor.u32 %v839, %v842
    %v844 = vsel %vm809, %v834, %v843
    %v846 = vshrl.u32 %v639, 16
    %v848 = vrot.slane %v846, 1
    %v849 = vshll.u32 %v639, 16
    %v851 = vrot.slane %v849, 2
    %v852 = vor.u32 %v848, %v851
    %v853 = vsel %vm809, %v843, %v852
    %v855 = vshrl.u32 %v808, 16
    %v857 = vrot.slane %v855, 1
    %v858 = vshll.u32 %v808, 16
    %v860 = vrot.slane %v858, 2
    %v861 = vor.u32 %v857, %v860
    %v862 = vsel %vm809, %v852, %v861
    %v884 = vunpack.c.l.b16 %v790
    %v885 = vunpack.c.l.b16 %v791
    %v886 = vunpack.c.l.b16 %v792
    %v887 = vunpack.c.l.b16 %v793
    %v888 = vunpack.c.l.b16 %v794
    %v889 = vunpack.c.l.b16 %v795
    %v890 = vunpack.c.l.b16 %v796
    %v891 = vunpack.c.l.b16 %v797
    %v892 = vunpack.c.l.b16 %v798
    %v893 = vunpack.c.l.b16 %v799
    %v894 = vunpack.c.l.b16 %v800
    %v895 = vunpack.c.l.b16 %v801
    %v896 = vunpack.c.l.b16 %v802
    %v897 = vunpack.c.l.b16 %v803
    %v898 = vunpack.c.l.b16 %v804
    %v899 = vunpack.c.l.b16 %v805
    %v900 = vpack.c.b16 %v885, %v884
    %v901 = vpack.c.b16 %v887, %v886
    %v902 = vpack.c.b16 %v889, %v888
    %v903 = vpack.c.b16 %v891, %v890
    %v904 = vpack.c.b16 %v893, %v892
    %v905 = vpack.c.b16 %v895, %v894
    %v906 = vpack.c.b16 %v897, %v896
    %v907 = vpack.c.b16 %v899, %v898
    %916 = vmatprep.subr.bf16.mxu0 0
    %917 = vmatpush1.bf16.msra.mxu0 %v900
    %918 = vmatprep.subr.bf16.mxu0 0
    %919 = vmatpush1.bf16.msra.mxu0 %v901
    %920 = vmatprep.subr.bf16.mxu0 0
    %921 = vmatpush1.bf16.msra.mxu0 %v902
    %922 = vmatprep.subr.bf16.mxu0 0
    %923 = vmatpush1.bf16.msra.mxu0 %v903
    %924 = vmatprep.subr.bf16.mxu0 0
    %925 = vmatpush1.bf16.msra.mxu0 %v904
    %926 = vmatprep.subr.bf16.mxu0 0
    %927 = vmatpush1.bf16.msra.mxu0 %v905
    %928 = vmatprep.subr.bf16.mxu0 0
    %929 = vmatpush1.bf16.msra.mxu0 %v906
    %930 = vmatprep.subr.bf16.mxu0 0
    %931 = vmatpush1.bf16.msra.mxu0 %v907
    %932 = vmatprep.subr.bf16.mxu0 0
    %933 = vmatpush1.bf16.msra.mxu0 0
    %934 = vmatprep.subr.bf16.mxu0 0
    %935 = vmatpush1.bf16.msra.mxu0 0
    %936 = vmatprep.subr.bf16.mxu0 0
    %937 = vmatpush1.bf16.msra.mxu0 0
    %938 = vmatprep.subr.bf16.mxu0 0
    %939 = vmatpush1.bf16.msra.mxu0 0
    %940 = vmatprep.subr.bf16.mxu0 0
    %941 = vmatpush1.bf16.msra.mxu0 0
    %942 = vmatprep.subr.bf16.mxu0 0
    %943 = vmatpush1.bf16.msra.mxu0 0
    %944 = vmatprep.subr.bf16.mxu0 0
    %945 = vmatpush1.bf16.msra.mxu0 0
    %946 = vmatprep.subr.bf16.mxu0 0
    %947 = vmatpush1.bf16.msra.mxu0 0
    %948 = vmatprep.mubr.bf16.mxu0 0
    %949 = vmatmul.mubr.bf16.gmra.mrb[0].mxu0 %v826
    %v950 = vpop.f32.mrb[0].mxu0
    %v951 = vadd.f32 0.0, %v950
    %v952 = vpop.f32.mrb[0].mxu0
    %v953 = vpop.f32.mrb[0].mxu0
    %v954 = vadd.f32 0.0, %v953
    %v955 = vpop.f32.mrb[0].mxu0
    %956 = vmatprep.mubr.bf16.mxu0 0
    %957 = vmatmul.mubr.bf16.gmra.mrb[0].mxu0 %v835
    %v958 = vpop.f32.mrb[0].mxu0
    %v959 = vadd.f32 0.0, %v958
    %v960 = vpop.f32.mrb[0].mxu0
    %v961 = vpop.f32.mrb[0].mxu0
    %v962 = vadd.f32 0.0, %v961
    %v963 = vpop.f32.mrb[0].mxu0
    %964 = vmatprep.mubr.bf16.mxu0 0
    %965 = vmatmul.mubr.bf16.gmra.mrb[0].mxu0 %v844
    %v966 = vpop.f32.mrb[0].mxu0
    %v967 = vadd.f32 0.0, %v966
    %v968 = vpop.f32.mrb[0].mxu0
    %v969 = vpop.f32.mrb[0].mxu0
    %v970 = vadd.f32 0.0, %v969
    %v971 = vpop.f32.mrb[0].mxu0
    %972 = vmatprep.mubr.bf16.mxu0 0
    %973 = vmatmul.mubr.bf16.gmra.mrb[0].mxu0 %v853
    %v974 = vpop.f32.mrb[0].mxu0
    %v975 = vadd.f32 0.0, %v974
    %v976 = vpop.f32.mrb[0].mxu0
    %v977 = vpop.f32.mrb[0].mxu0
    %v978 = vadd.f32 0.0, %v977
    %v979 = vpop.f32.mrb[0].mxu0
    %980 = vmatprep.mubr.bf16.mxu0 0
    %981 = vmatmul.mubr.bf16.gmra.mrb[0].mxu0 %v862
    %v982 = vpop.f32.mrb[0].mxu0
    %v983 = vadd.f32 0.0, %v982
    %v984 = vpop.f32.mrb[0].mxu0
    %v985 = vpop.f32.mrb[0].mxu0
    %v986 = vadd.f32 0.0, %v985
    %v987 = vpop.f32.mrb[0].mxu0
    %988 = vdwg.mxu0
    %v989 = vadd.f32 %v778, %v951
    %v990 = vadd.f32 %v779, %v954
    %v991 = vadd.f32 %v780, %v959
    %v992 = vadd.f32 %v781, %v962
    %v993 = vadd.f32 %v782, %v967
    %v994 = vadd.f32 %v783, %v970
    %v995 = vadd.f32 %v784, %v975
    %v996 = vadd.f32 %v785, %v978
    %v997 = vadd.f32 %v786, %v983
    %v998 = vadd.f32 %v787, %v986
    %v999 = vld [vmem:[#allocation2 + $0x4] sm:$0xc]
    %s1000 = scalar_lea.vmem [#allocation5], 320
    %v1001 = vld [vmem:[%s1000] sm:$0xf]
    %v1002 = vld [vmem:[%s1000 + $0x4] sm:$0xf]
    %v1003 = vld [vmem:[%s1000 + $0x8] sm:$0xf]
    %v1004 = vld [vmem:[%s1000 + $0xc] sm:$0xf]
    %v1005 = vld [vmem:[%s1000 + $0x10] sm:$0xf]
    %v1006 = vld [vmem:[%s1000 + $0x14] sm:$0xf]
    %v1007 = vld [vmem:[%s1000 + $0x18] sm:$0xf]
    %v1008 = vld [vmem:[%s1000 + $0x1c] sm:$0xf]
    %v1009 = vld [vmem:[%s1000 + $0x20] sm:$0xf]
    %v1010 = vld [vmem:[%s1000 + $0x24] sm:$0xf]
    %v1011 = vld [vmem:[%s1000 + $0x28] sm:$0xf]
    %v1012 = vld [vmem:[%s1000 + $0x2c] sm:$0xf]
    %v1013 = vld [vmem:[%s1000 + $0x30] sm:$0xf]
    %v1014 = vld [vmem:[%s1000 + $0x34] sm:$0xf]
    %v1015 = vld [vmem:[%s1000 + $0x38] sm:$0xf]
    %v1016 = vld [vmem:[%s1000 + $0x3c] sm:$0xf]
    %v1018 = vunpack.c.l.b16 %v999
    %v1019 = vpack.c.b16 %v625, %v1018
    %vm1020 = vcmask 1045504
    %v1021 = vrot.slane %v1019, 2
    %v1022 = vrot.slane %v636, 2
    %v1023 = vsel %vm1020, %v1021, %v1022
    %v1024 = vrot.slane %v637, 2
    %v1025 = vsel %vm1020, %v1022, %v1024
    %v1026 = vrot.slane %v638, 2
    %v1027 = vsel %vm1020, %v1024, %v1026
    %v1028 = vrot.slane %v639, 2
    %v1029 = vsel %vm1020, %v1026, %v1028
    %v1030 = vrot.slane %v808, 2
    %v1031 = vsel %vm1020, %v1028, %v1030
    %v1053 = vunpack.c.l.b16 %v1001
    %v1054 = vunpack.c.l.b16 %v1002
    %v1055 = vunpack.c.l.b16 %v1003
    %v1056 = vunpack.c.l.b16 %v1004
    %v1057 = vunpack.c.l.b16 %v1005
    %v1058 = vunpack.c.l.b16 %v1006
    %v1059 = vunpack.c.l.b16 %v1007
    %v1060 = vunpack.c.l.b16 %v1008
    %v1061 = vunpack.c.l.b16 %v1009
    %v1062 = vunpack.c.l.b16 %v1010
    %v1063 = vunpack.c.l.b16 %v1011
    %v1064 = vunpack.c.l.b16 %v1012
    %v1065 = vunpack.c.l.b16 %v1013
    %v1066 = vunpack.c.l.b16 %v1014
    %v1067 = vunpack.c.l.b16 %v1015
    %v1068 = vunpack.c.l.b16 %v1016
    %v1069 = vpack.c.b16 %v1054, %v1053
    %v1070 = vpack.c.b16 %v1056, %v1055
    %v1071 = vpack.c.b16 %v1058, %v1057
    %v1072 = vpack.c.b16 %v1060, %v1059
    %v1073 = vpack.c.b16 %v1062, %v1061
    %v1074 = vpack.c.b16 %v1064, %v1063
    %v1075 = vpack.c.b16 %v1066, %v1065
    %v1076 = vpack.c.b16 %v1068, %v1067
    %1085 = vmatprep.subr.bf16.mxu0 0
    %1086 = vmatpush1.bf16.msra.mxu0 %v1069
    %1087 = vmatprep.subr.bf16.mxu0 0
    %1088 = vmatpush1.bf16.msra.mxu0 %v1070
    %1089 = vmatprep.subr.bf16.mxu0 0
    %1090 = vmatpush1.bf16.msra.mxu0 %v1071
    %1091 = vmatprep.subr.bf16.mxu0 0
    %1092 = vmatpush1.bf16.msra.mxu0 %v1072
    %1093 = vmatprep.subr.bf16.mxu0 0
    %1094 = vmatpush1.bf16.msra.mxu0 %v1073
    %1095 = vmatprep.subr.bf16.mxu0 0
    %1096 = vmatpush1.bf16.msra.mxu0 %v1074
    %1097 = vmatprep.subr.bf16.mxu0 0
    %1098 = vmatpush1.bf16.msra.mxu0 %v1075
    %1099 = vmatprep.subr.bf16.mxu0 0
    %1100 = vmatpush1.bf16.msra.mxu0 %v1076
    %1101 = vmatprep.subr.bf16.mxu0 0
    %1102 = vmatpush1.bf16.msra.mxu0 0
    %1103 = vmatprep.subr.bf16.mxu0 0
    %1104 = vmatpush1.bf16.msra.mxu0 0
    %1105 = vmatprep.subr.bf16.mxu0 0
    %1106 = vmatpush1.bf16.msra.mxu0 0
    %1107 = vmatprep.subr.bf16.mxu0 0
    %1108 = vmatpush1.bf16.msra.mxu0 0
    %1109 = vmatprep.subr.bf16.mxu0 0
    %1110 = vmatpush1.bf16.msra.mxu0 0
    %1111 = vmatprep.subr.bf16.mxu0 0
    %1112 = vmatpush1.bf16.msra.mxu0 0
    %1113 = vmatprep.subr.bf16.mxu0 0
    %1114 = vmatpush1.bf16.msra.mxu0 0
    %1115 = vmatprep.subr.bf16.mxu0 0
    %1116 = vmatpush1.bf16.msra.mxu0 0
    %1117 = vmatprep.mubr.bf16.mxu0 0
    %1118 = vmatmul.mubr.bf16.gmra.mrb[0].mxu0 %v1023
    %v1119 = vpop.f32.mrb[0].mxu0
    %v1120 = vadd.f32 0.0, %v1119
    %v1121 = vpop.f32.mrb[0].mxu0
    %v1122 = vpop.f32.mrb[0].mxu0
    %v1123 = vadd.f32 0.0, %v1122
    %v1124 = vpop.f32.mrb[0].mxu0
    %1125 = vmatprep.mubr.bf16.mxu0 0
    %1126 = vmatmul.mubr.bf16.gmra.mrb[0].mxu0 %v1025
    %v1127 = vpop.f32.mrb[0].mxu0
    %v1128 = vadd.f32 0.0, %v1127
    %v1129 = vpop.f32.mrb[0].mxu0
    %v1130 = vpop.f32.mrb[0].mxu0
    %v1131 = vadd.f32 0.0, %v1130
    %v1132 = vpop.f32.mrb[0].mxu0
    %1133 = vmatprep.mubr.bf16.mxu0 0
    %1134 = vmatmul.mubr.bf16.gmra.mrb[0].mxu0 %v1027
    %v1135 = vpop.f32.mrb[0].mxu0
    %v1136 = vadd.f32 0.0, %v1135
    %v1137 = vpop.f32.mrb[0].mxu0
    %v1138 = vpop.f32.mrb[0].mxu0
    %v1139 = vadd.f32 0.0, %v1138
    %v1140 = vpop.f32.mrb[0].mxu0
    %1141 = vmatprep.mubr.bf16.mxu0 0
    %1142 = vmatmul.mubr.bf16.gmra.mrb[0].mxu0 %v1029
    %v1143 = vpop.f32.mrb[0].mxu0
    %v1144 = vadd.f32 0.0, %v1143
    %v1145 = vpop.f32.mrb[0].mxu0
    %v1146 = vpop.f32.mrb[0].mxu0
    %v1147 = vadd.f32 0.0, %v1146
    %v1148 = vpop.f32.mrb[0].mxu0
    %1149 = vmatprep.mubr.bf16.mxu0 0
    %1150 = vmatmul.mubr.bf16.gmra.mrb[0].mxu0 %v1031
    %v1151 = vpop.f32.mrb[0].mxu0
    %v1152 = vadd.f32 0.0, %v1151
    %v1153 = vpop.f32.mrb[0].mxu0
    %v1154 = vpop.f32.mrb[0].mxu0
    %v1155 = vadd.f32 0.0, %v1154
    %v1156 = vpop.f32.mrb[0].mxu0
    %1157 = vdwg.mxu0
    %v1158 = vadd.f32 %v989, %v1120
    %v1159 = vadd.f32 %v990, %v1123
    %v1160 = vadd.f32 %v991, %v1128
    %v1161 = vadd.f32 %v992, %v1131
    %v1162 = vadd.f32 %v993, %v1136
    %v1163 = vadd.f32 %v994, %v1139
    %v1164 = vadd.f32 %v995, %v1144
    %v1165 = vadd.f32 %v996, %v1147
    %v1166 = vadd.f32 %v997, %v1152
    %v1167 = vadd.f32 %v998, %v1155
    %v1168 = vld [vmem:[#allocation2 + $0x8] sm:$0xc]
    %v1169 = vld [vmem:[#allocation2 + $0xc] sm:$0xf]
    %v1170 = vld [vmem:[#allocation2 + $0x10] sm:$0xf]
    %v1171 = vld [vmem:[#allocation2 + $0x14] sm:$0xf]
    %v1172 = vld [vmem:[#allocation2 + $0x18] sm:$0xf]
    %v1173 = vld [vmem:[#allocation2 + $0x1c] sm:$0xf]
    %v1174 = vld [vmem:[#allocation2 + $0x20] sm:$0xf]
    %v1175 = vld [vmem:[#allocation2 + $0x24] sm:$0xf]
    %v1176 = vld [vmem:[#allocation2 + $0x28] sm:$0xf]
    %v1177 = vld [vmem:[#allocation2 + $0x2c] sm:$0xf]
    %v1178 = vld [vmem:[#allocation2 + $0x30] sm:$0x3]
    %s1179 = scalar_lea.vmem [#allocation5], 384
    %v1180 = vld [vmem:[%s1179] sm:$0xf]
    %v1181 = vld [vmem:[%s1179 + $0x4] sm:$0xf]
    %v1182 = vld [vmem:[%s1179 + $0x8] sm:$0xf]
    %v1183 = vld [vmem:[%s1179 + $0xc] sm:$0xf]
    %v1184 = vld [vmem:[%s1179 + $0x10] sm:$0xf]
    %v1185 = vld [vmem:[%s1179 + $0x14] sm:$0xf]
    %v1186 = vld [vmem:[%s1179 + $0x18] sm:$0xf]
    %v1187 = vld [vmem:[%s1179 + $0x1c] sm:$0xf]
    %v1188 = vld [vmem:[%s1179 + $0x20] sm:$0xf]
    %v1189 = vld [vmem:[%s1179 + $0x24] sm:$0xf]
    %v1190 = vld [vmem:[%s1179 + $0x28] sm:$0xf]
    %v1191 = vld [vmem:[%s1179 + $0x2c] sm:$0xf]
    %v1192 = vld [vmem:[%s1179 + $0x30] sm:$0xf]
    %v1193 = vld [vmem:[%s1179 + $0x34] sm:$0xf]
    %v1194 = vld [vmem:[%s1179 + $0x38] sm:$0xf]
    %v1195 = vld [vmem:[%s1179 + $0x3c] sm:$0xf]
    %v1207 = vunpack.c.l.b16 %v1168
    %v1208 = vunpack.c.l.b16 %v1169
    %v1209 = vunpack.c.l.b16 %v1170
    %v1210 = vunpack.c.l.b16 %v1171
    %v1211 = vunpack.c.l.b16 %v1172
    %v1212 = vunpack.c.l.b16 %v1173
    %v1213 = vunpack.c.l.b16 %v1174
    %v1214 = vunpack.c.l.b16 %v1175
    %v1215 = vunpack.c.l.b16 %v1176
    %v1216 = vunpack.c.l.b16 %v1177
    %v1217 = vunpack.c.l.b16 %v1178
    %v1218 = vpack.c.b16 %v1208, %v1207
    %v1219 = vpack.c.b16 %v1210, %v1209
    %v1220 = vpack.c.b16 %v1212, %v1211
    %v1221 = vpack.c.b16 %v1214, %v1213
    %v1222 = vpack.c.b16 %v1216, %v1215
    %v1223 = vpack.c.b16 %v1217, %v1217
    %v1224 = vrot.slane %v1218, 2
    %v1225 = vrot.slane %v1219, 2
    %v1226 = vsel %vm1020, %v1224, %v1225
    %v1227 = vrot.slane %v1220, 2
    %v1228 = vsel %vm1020, %v1225, %v1227
    %v1229 = vrot.slane %v1221, 2
    %v1230 = vsel %vm1020, %v1227, %v1229
    %v1231 = vrot.slane %v1222, 2
    %v1232 = vsel %vm1020, %v1229, %v1231
    %v1233 = vrot.slane %v1223, 2
    %v1234 = vsel %vm1020, %v1231, %v1233
    %v1256 = vunpack.c.l.b16 %v1180
    %v1257 = vunpack.c.l.b16 %v1181
    %v1258 = vunpack.c.l.b16 %v1182
    %v1259 = vunpack.c.l.b16 %v1183
    %v1260 = vunpack.c.l.b16 %v1184
    %v1261 = vunpack.c.l.b16 %v1185
    %v1262 = vunpack.c.l.b16 %v1186
    %v1263 = vunpack.c.l.b16 %v1187
    %v1264 = vunpack.c.l.b16 %v1188
    %v1265 = vunpack.c.l.b16 %v1189
    %v1266 = vunpack.c.l.b16 %v1190
    %v1267 = vunpack.c.l.b16 %v1191
    %v1268 = vunpack.c.l.b16 %v1192
    %v1269 = vunpack.c.l.b16 %v1193
    %v1270 = vunpack.c.l.b16 %v1194
    %v1271 = vunpack.c.l.b16 %v1195
    %v1272 = vpack.c.b16 %v1257, %v1256
    %v1273 = vpack.c.b16 %v1259, %v1258
    %v1274 = vpack.c.b16 %v1261, %v1260
    %v1275 = vpack.c.b16 %v1263, %v1262
    %v1276 = vpack.c.b16 %v1265, %v1264
    %v1277 = vpack.c.b16 %v1267, %v1266
    %v1278 = vpack.c.b16 %v1269, %v1268
    %v1279 = vpack.c.b16 %v1271, %v1270
    %1288 = vmatprep.subr.bf16.mxu0 0
    %1289 = vmatpush1.bf16.msra.mxu0 %v1272
    %1290 = vmatprep.subr.bf16.mxu0 0
    %1291 = vmatpush1.bf16.msra.mxu0 %v1273
    %1292 = vmatprep.subr.bf16.mxu0 0
    %1293 = vmatpush1.bf16.msra.mxu0 %v1274
    %1294 = vmatprep.subr.bf16.mxu0 0
    %1295 = vmatpush1.bf16.msra.mxu0 %v1275
    %1296 = vmatprep.subr.bf16.mxu0 0
    %1297 = vmatpush1.bf16.msra.mxu0 %v1276
    %1298 = vmatprep.subr.bf16.mxu0 0
    %1299 = vmatpush1.bf16.msra.mxu0 %v1277
    %1300 = vmatprep.subr.bf16.mxu0 0
    %1301 = vmatpush1.bf16.msra.mxu0 %v1278
    %1302 = vmatprep.subr.bf16.mxu0 0
    %1303 = vmatpush1.bf16.msra.mxu0 %v1279
    %1304 = vmatprep.subr.bf16.mxu0 0
    %1305 = vmatpush1.bf16.msra.mxu0 0
    %1306 = vmatprep.subr.bf16.mxu0 0
    %1307 = vmatpush1.bf16.msra.mxu0 0
    %1308 = vmatprep.subr.bf16.mxu0 0
    %1309 = vmatpush1.bf16.msra.mxu0 0
    %1310 = vmatprep.subr.bf16.mxu0 0
    %1311 = vmatpush1.bf16.msra.mxu0 0
    %1312 = vmatprep.subr.bf16.mxu0 0
    %1313 = vmatpush1.bf16.msra.mxu0 0
    %1314 = vmatprep.subr.bf16.mxu0 0
    %1315 = vmatpush1.bf16.msra.mxu0 0
    %1316 = vmatprep.subr.bf16.mxu0 0
    %1317 = vmatpush1.bf16.msra.mxu0 0
    %1318 = vmatprep.subr.bf16.mxu0 0
    %1319 = vmatpush1.bf16.msra.mxu0 0
    %1320 = vmatprep.mubr.bf16.mxu0 0
    %1321 = vmatmul.mubr.bf16.gmra.mrb[0].mxu0 %v1226
    %v1322 = vpop.f32.mrb[0].mxu0
    %v1323 = vadd.f32 0.0, %v1322
    %v1324 = vpop.f32.mrb[0].mxu0
    %v1325 = vpop.f32.mrb[0].mxu0
    %v1326 = vadd.f32 0.0, %v1325
    %v1327 = vpop.f32.mrb[0].mxu0
    %1328 = vmatprep.mubr.bf16.mxu0 0
    %1329 = vmatmul.mubr.bf16.gmra.mrb[0].mxu0 %v1228
    %v1330 = vpop.f32.mrb[0].mxu0
    %v1331 = vadd.f32 0.0, %v1330
    %v1332 = vpop.f32.mrb[0].mxu0
    %v1333 = vpop.f32.mrb[0].mxu0
    %v1334 = vadd.f32 0.0, %v1333
    %v1335 = vpop.f32.mrb[0].mxu0
    %1336 = vmatprep.mubr.bf16.mxu0 0
    %1337 = vmatmul.mubr.bf16.gmra.mrb[0].mxu0 %v1230
    %v1338 = vpop.f32.mrb[0].mxu0
    %v1339 = vadd.f32 0.0, %v1338
    %v1340 = vpop.f32.mrb[0].mxu0
    %v1341 = vpop.f32.mrb[0].mxu0
    %v1342 = vadd.f32 0.0, %v1341
    %v1343 = vpop.f32.mrb[0].mxu0
    %1344 = vmatprep.mubr.bf16.mxu0 0
    %1345 = vmatmul.mubr.bf16.gmra.mrb[0].mxu0 %v1232
    %v1346 = vpop.f32.mrb[0].mxu0
    %v1347 = vadd.f32 0.0, %v1346
    %v1348 = vpop.f32.mrb[0].mxu0
    %v1349 = vpop.f32.mrb[0].mxu0
    %v1350 = vadd.f32 0.0, %v1349
    %v1351 = vpop.f32.mrb[0].mxu0
    %1352 = vmatprep.mubr.bf16.mxu0 0
    %1353 = vmatmul.mubr.bf16.gmra.mrb[0].mxu0 %v1234
    %v1354 = vpop.f32.mrb[0].mxu0
    %v1355 = vadd.f32 0.0, %v1354
    %v1356 = vpop.f32.mrb[0].mxu0
    %v1357 = vpop.f32.mrb[0].mxu0
    %v1358 = vadd.f32 0.0, %v1357
    %v1359 = vpop.f32.mrb[0].mxu0
    %1360 = vdwg.mxu0
    %v1361 = vadd.f32 %v1158, %v1323
    %v1362 = vadd.f32 %v1159, %v1326
    %v1363 = vadd.f32 %v1160, %v1331
    %v1364 = vadd.f32 %v1161, %v1334
    %v1365 = vadd.f32 %v1162, %v1339
    %v1366 = vadd.f32 %v1163, %v1342
    %v1367 = vadd.f32 %v1164, %v1347
    %v1368 = vadd.f32 %v1165, %v1350
    %v1369 = vadd.f32 %v1166, %v1355
    %v1370 = vadd.f32 %v1167, %v1358
    %v1371 = vld [vmem:[#allocation2 + $0x30] sm:$0x7]
    %s1372 = scalar_lea.vmem [#allocation5], 448
    %v1373 = vld [vmem:[%s1372] sm:$0xf]
    %v1374 = vld [vmem:[%s1372 + $0x4] sm:$0xf]
    %v1375 = vld [vmem:[%s1372 + $0x8] sm:$0xf]
    %v1376 = vld [vmem:[%s1372 + $0xc] sm:$0xf]
    %v1377 = vld [vmem:[%s1372 + $0x10] sm:$0xf]
    %v1378 = vld [vmem:[%s1372 + $0x14] sm:$0xf]
    %v1379 = vld [vmem:[%s1372 + $0x18] sm:$0xf]
    %v1380 = vld [vmem:[%s1372 + $0x1c] sm:$0xf]
    %v1381 = vld [vmem:[%s1372 + $0x20] sm:$0xf]
    %v1382 = vld [vmem:[%s1372 + $0x24] sm:$0xf]
    %v1383 = vld [vmem:[%s1372 + $0x28] sm:$0xf]
    %v1384 = vld [vmem:[%s1372 + $0x2c] sm:$0xf]
    %v1385 = vld [vmem:[%s1372 + $0x30] sm:$0xf]
    %v1386 = vld [vmem:[%s1372 + $0x34] sm:$0xf]
    %v1387 = vld [vmem:[%s1372 + $0x38] sm:$0xf]
    %v1388 = vld [vmem:[%s1372 + $0x3c] sm:$0xf]
    %v1390 = vunpack.c.l.b16 %v1371
    %v1391 = vpack.c.b16 %v1390, %v1390
    %vm1392 = vsmask.f32 5376
    %v1394 = vshrl.u32 %v1218, 16
    %v1396 = vrot.slane %v1394, 2
    %v1397 = vshll.u32 %v1218, 16
    %v1399 = vrot.slane %v1397, 3
    %v1400 = vor.u32 %v1396, %v1399
    %v1402 = vshrl.u32 %v1219, 16
    %v1404 = vrot.slane %v1402, 2
    %v1405 = vshll.u32 %v1219, 16
    %v1407 = vrot.slane %v1405, 3
    %v1408 = vor.u32 %v1404, %v1407
    %v1409 = vsel %vm1392, %v1400, %v1408
    %v1411 = vshrl.u32 %v1220, 16
    %v1413 = vrot.slane %v1411, 2
    %v1414 = vshll.u32 %v1220, 16
    %v1416 = vrot.slane %v1414, 3
    %v1417 = vor.u32 %v1413, %v1416
    %v1418 = vsel %vm1392, %v1408, %v1417
    %v1420 = vshrl.u32 %v1221, 16
    %v1422 = vrot.slane %v1420, 2
    %v1423 = vshll.u32 %v1221, 16
    %v1425 = vrot.slane %v1423, 3
    %v1426 = vor.u32 %v1422, %v1425
    %v1427 = vsel %vm1392, %v1417, %v1426
    %v1429 = vshrl.u32 %v1222, 16
    %v1431 = vrot.slane %v1429, 2
    %v1432 = vshll.u32 %v1222, 16
    %v1434 = vrot.slane %v1432, 3
    %v1435 = vor.u32 %v1431, %v1434
    %v1436 = vsel %vm1392, %v1426, %v1435
    %v1438 = vshrl.u32 %v1391, 16
    %v1440 = vrot.slane %v1438, 2
    %v1441 = vshll.u32 %v1391, 16
    %v1443 = vrot.slane %v1441, 3
    %v1444 = vor.u32 %v1440, %v1443
    %v1445 = vsel %vm1392, %v1435, %v1444
    %v1467 = vunpack.c.l.b16 %v1373
    %v1468 = vunpack.c.l.b16 %v1374
    %v1469 = vunpack.c.l.b16 %v1375
    %v1470 = vunpack.c.l.b16 %v1376
    %v1471 = vunpack.c.l.b16 %v1377
    %v1472 = vunpack.c.l.b16 %v1378
    %v1473 = vunpack.c.l.b16 %v1379
    %v1474 = vunpack.c.l.b16 %v1380
    %v1475 = vunpack.c.l.b16 %v1381
    %v1476 = vunpack.c.l.b16 %v1382
    %v1477 = vunpack.c.l.b16 %v1383
    %v1478 = vunpack.c.l.b16 %v1384
    %v1479 = vunpack.c.l.b16 %v1385
    %v1480 = vunpack.c.l.b16 %v1386
    %v1481 = vunpack.c.l.b16 %v1387
    %v1482 = vunpack.c.l.b16 %v1388
    %v1483 = vpack.c.b16 %v1468, %v1467
    %v1484 = vpack.c.b16 %v1470, %v1469
    %v1485 = vpack.c.b16 %v1472, %v1471
    %v1486 = vpack.c.b16 %v1474, %v1473
    %v1487 = vpack.c.b16 %v1476, %v1475
    %v1488 = vpack.c.b16 %v1478, %v1477
    %v1489 = vpack.c.b16 %v1480, %v1479
    %v1490 = vpack.c.b16 %v1482, %v1481
    %1499 = vmatprep.subr.bf16.mxu0 0
    %1500 = vmatpush1.bf16.msra.mxu0 %v1483
    %1501 = vmatprep.subr.bf16.mxu0 0
    %1502 = vmatpush1.bf16.msra.mxu0 %v1484
    %1503 = vmatprep.subr.bf16.mxu0 0
    %1504 = vmatpush1.bf16.msra.mxu0 %v1485
    %1505 = vmatprep.subr.bf16.mxu0 0
    %1506 = vmatpush1.bf16.msra.mxu0 %v1486
    %1507 = vmatprep.subr.bf16.mxu0 0
    %1508 = vmatpush1.bf16.msra.mxu0 %v1487
    %1509 = vmatprep.subr.bf16.mxu0 0
    %1510 = vmatpush1.bf16.msra.mxu0 %v1488
    %1511 = vmatprep.subr.bf16.mxu0 0
    %1512 = vmatpush1.bf16.msra.mxu0 %v1489
    %1513 = vmatprep.subr.bf16.mxu0 0
    %1514 = vmatpush1.bf16.msra.mxu0 %v1490
    %1515 = vmatprep.subr.bf16.mxu0 0
    %1516 = vmatpush1.bf16.msra.mxu0 0
    %1517 = vmatprep.subr.bf16.mxu0 0
    %1518 = vmatpush1.bf16.msra.mxu0 0
    %1519 = vmatprep.subr.bf16.mxu0 0
    %1520 = vmatpush1.bf16.msra.mxu0 0
    %1521 = vmatprep.subr.bf16.mxu0 0
    %1522 = vmatpush1.bf16.msra.mxu0 0
    %1523 = vmatprep.subr.bf16.mxu0 0
    %1524 = vmatpush1.bf16.msra.mxu0 0
    %1525 = vmatprep.subr.bf16.mxu0 0
    %1526 = vmatpush1.bf16.msra.mxu0 0
    %1527 = vmatprep.subr.bf16.mxu0 0
    %1528 = vmatpush1.bf16.msra.mxu0 0
    %1529 = vmatprep.subr.bf16.mxu0 0
    %1530 = vmatpush1.bf16.msra.mxu0 0
    %1531 = vmatprep.mubr.bf16.mxu0 0
    %1532 = vmatmul.mubr.bf16.gmra.mrb[0].mxu0 %v1409
    %v1533 = vpop.f32.mrb[0].mxu0
    %v1534 = vadd.f32 0.0, %v1533
    %v1535 = vpop.f32.mrb[0].mxu0
    %v1536 = vpop.f32.mrb[0].mxu0
    %v1537 = vadd.f32 0.0, %v1536
    %v1538 = vpop.f32.mrb[0].mxu0
    %1539 = vmatprep.mubr.bf16.mxu0 0
    %1540 = vmatmul.mubr.bf16.gmra.mrb[0].mxu0 %v1418
    %v1541 = vpop.f32.mrb[0].mxu0
    %v1542 = vadd.f32 0.0, %v1541
    %v1543 = vpop.f32.mrb[0].mxu0
    %v1544 = vpop.f32.mrb[0].mxu0
    %v1545 = vadd.f32 0.0, %v1544
    %v1546 = vpop.f32.mrb[0].mxu0
    %1547 = vmatprep.mubr.bf16.mxu0 0
    %1548 = vmatmul.mubr.bf16.gmra.mrb[0].mxu0 %v1427
    %v1549 = vpop.f32.mrb[0].mxu0
    %v1550 = vadd.f32 0.0, %v1549
    %v1551 = vpop.f32.mrb[0].mxu0
    %v1552 = vpop.f32.mrb[0].mxu0
    %v1553 = vadd.f32 0.0, %v1552
    %v1554 = vpop.f32.mrb[0].mxu0
    %1555 = vmatprep.mubr.bf16.mxu0 0
    %1556 = vmatmul.mubr.bf16.gmra.mrb[0].mxu0 %v1436
    %v1557 = vpop.f32.mrb[0].mxu0
    %v1558 = vadd.f32 0.0, %v1557
    %v1559 = vpop.f32.mrb[0].mxu0
    %v1560 = vpop.f32.mrb[0].mxu0
    %v1561 = vadd.f32 0.0, %v1560
    %v1562 = vpop.f32.mrb[0].mxu0
    %1563 = vmatprep.mubr.bf16.mxu0 0
    %1564 = vmatmul.mubr.bf16.gmra.mrb[0].mxu0 %v1445
    %v1565 = vpop.f32.mrb[0].mxu0
    %v1566 = vadd.f32 0.0, %v1565
    %v1567 = vpop.f32.mrb[0].mxu0
    %v1568 = vpop.f32.mrb[0].mxu0
    %v1569 = vadd.f32 0.0, %v1568
    %v1570 = vpop.f32.mrb[0].mxu0
    %1571 = vdwg.mxu0
    %v1572 = vadd.f32 %v1361, %v1534
    %v1573 = vadd.f32 %v1362, %v1537
    %v1574 = vadd.f32 %v1363, %v1542
    %v1575 = vadd.f32 %v1364, %v1545
    %v1576 = vadd.f32 %v1365, %v1550
    %v1577 = vadd.f32 %v1366, %v1553
    %v1578 = vadd.f32 %v1367, %v1558
    %v1579 = vadd.f32 %v1368, %v1561
    %v1580 = vadd.f32 %v1369, %v1566
    %v1581 = vadd.f32 %v1370, %v1569
    %v1582 = vld [vmem:[#allocation2 + $0x8] sm:$0x8]
    %s1583 = scalar_lea.vmem [#allocation5], 512
    %v1584 = vld [vmem:[%s1583] sm:$0xf]
    %v1585 = vld [vmem:[%s1583 + $0x4] sm:$0xf]
    %v1586 = vld [vmem:[%s1583 + $0x8] sm:$0xf]
    %v1587 = vld [vmem:[%s1583 + $0xc] sm:$0xf]
    %v1588 = vld [vmem:[%s1583 + $0x10] sm:$0xf]
    %v1589 = vld [vmem:[%s1583 + $0x14] sm:$0xf]
    %v1590 = vld [vmem:[%s1583 + $0x18] sm:$0xf]
    %v1591 = vld [vmem:[%s1583 + $0x1c] sm:$0xf]
    %v1592 = vld [vmem:[%s1583 + $0x20] sm:$0xf]
    %v1593 = vld [vmem:[%s1583 + $0x24] sm:$0xf]
    %v1594 = vld [vmem:[%s1583 + $0x28] sm:$0xf]
    %v1595 = vld [vmem:[%s1583 + $0x2c] sm:$0xf]
    %v1596 = vld [vmem:[%s1583 + $0x30] sm:$0xf]
    %v1597 = vld [vmem:[%s1583 + $0x34] sm:$0xf]
    %v1598 = vld [vmem:[%s1583 + $0x38] sm:$0xf]
    %v1599 = vld [vmem:[%s1583 + $0x3c] sm:$0xf]
    %v1601 = vunpack.c.l.b16 %v1582
    %v1602 = vpack.c.b16 %v1208, %v1601
    %vm1603 = vcmask 1044480
    %v1604 = vrot.slane %v1602, 3
    %v1605 = vrot.slane %v1219, 3
    %v1606 = vsel %vm1603, %v1604, %v1605
    %v1607 = vrot.slane %v1220, 3
    %v1608 = vsel %vm1603, %v1605, %v1607
    %v1609 = vrot.slane %v1221, 3
    %v1610 = vsel %vm1603, %v1607, %v1609
    %v1611 = vrot.slane %v1222, 3
    %v1612 = vsel %vm1603, %v1609, %v1611
    %v1613 = vrot.slane %v1391, 3
    %v1614 = vsel %vm1603, %v1611, %v1613
    %v1636 = vunpack.c.l.b16 %v1584
    %v1637 = vunpack.c.l.b16 %v1585
    %v1638 = vunpack.c.l.b16 %v1586
    %v1639 = vunpack.c.l.b16 %v1587
    %v1640 = vunpack.c.l.b16 %v1588
    %v1641 = vunpack.c.l.b16 %v1589
    %v1642 = vunpack.c.l.b16 %v1590
    %v1643 = vunpack.c.l.b16 %v1591
    %v1644 = vunpack.c.l.b16 %v1592
    %v1645 = vunpack.c.l.b16 %v1593
    %v1646 = vunpack.c.l.b16 %v1594
    %v1647 = vunpack.c.l.b16 %v1595
    %v1648 = vunpack.c.l.b16 %v1596
    %v1649 = vunpack.c.l.b16 %v1597
    %v1650 = vunpack.c.l.b16 %v1598
    %v1651 = vunpack.c.l.b16 %v1599
    %v1652 = vpack.c.b16 %v1637, %v1636
    %v1653 = vpack.c.b16 %v1639, %v1638
    %v1654 = vpack.c.b16 %v1641, %v1640
    %v1655 = vpack.c.b16 %v1643, %v1642
    %v1656 = vpack.c.b16 %v1645, %v1644
    %v1657 = vpack.c.b16 %v1647, %v1646
    %v1658 = vpack.c.b16 %v1649, %v1648
    %v1659 = vpack.c.b16 %v1651, %v1650
    %1668 = vmatprep.subr.bf16.mxu0 0
    %1669 = vmatpush1.bf16.msra.mxu0 %v1652
    %1670 = vmatprep.subr.bf16.mxu0 0
    %1671 = vmatpush1.bf16.msra.mxu0 %v1653
    %1672 = vmatprep.subr.bf16.mxu0 0
    %1673 = vmatpush1.bf16.msra.mxu0 %v1654
    %1674 = vmatprep.subr.bf16.mxu0 0
    %1675 = vmatpush1.bf16.msra.mxu0 %v1655
    %1676 = vmatprep.subr.bf16.mxu0 0
    %1677 = vmatpush1.bf16.msra.mxu0 %v1656
    %1678 = vmatprep.subr.bf16.mxu0 0
    %1679 = vmatpush1.bf16.msra.mxu0 %v1657
    %1680 = vmatprep.subr.bf16.mxu0 0
    %1681 = vmatpush1.bf16.msra.mxu0 %v1658
    %1682 = vmatprep.subr.bf16.mxu0 0
    %1683 = vmatpush1.bf16.msra.mxu0 %v1659
    %1684 = vmatprep.subr.bf16.mxu0 0
    %1685 = vmatpush1.bf16.msra.mxu0 0
    %1686 = vmatprep.subr.bf16.mxu0 0
    %1687 = vmatpush1.bf16.msra.mxu0 0
    %1688 = vmatprep.subr.bf16.mxu0 0
    %1689 = vmatpush1.bf16.msra.mxu0 0
    %1690 = vmatprep.subr.bf16.mxu0 0
    %1691 = vmatpush1.bf16.msra.mxu0 0
    %1692 = vmatprep.subr.bf16.mxu0 0
    %1693 = vmatpush1.bf16.msra.mxu0 0
    %1694 = vmatprep.subr.bf16.mxu0 0
    %1695 = vmatpush1.bf16.msra.mxu0 0
    %1696 = vmatprep.subr.bf16.mxu0 0
    %1697 = vmatpush1.bf16.msra.mxu0 0
    %1698 = vmatprep.subr.bf16.mxu0 0
    %1699 = vmatpush1.bf16.msra.mxu0 0
    %1700 = vmatprep.mubr.bf16.mxu0 0
    %1701 = vmatmul.mubr.bf16.gmra.mrb[0].mxu0 %v1606
    %v1702 = vpop.f32.mrb[0].mxu0
    %v1703 = vadd.f32 0.0, %v1702
    %v1704 = vpop.f32.mrb[0].mxu0
    %v1705 = vpop.f32.mrb[0].mxu0
    %v1706 = vadd.f32 0.0, %v1705
    %v1707 = vpop.f32.mrb[0].mxu0
    %1708 = vmatprep.mubr.bf16.mxu0 0
    %1709 = vmatmul.mubr.bf16.gmra.mrb[0].mxu0 %v1608
    %v1710 = vpop.f32.mrb[0].mxu0
    %v1711 = vadd.f32 0.0, %v1710
    %v1712 = vpop.f32.mrb[0].mxu0
    %v1713 = vpop.f32.mrb[0].mxu0
    %v1714 = vadd.f32 0.0, %v1713
    %v1715 = vpop.f32.mrb[0].mxu0
    %1716 = vmatprep.mubr.bf16.mxu0 0
    %1717 = vmatmul.mubr.bf16.gmra.mrb[0].mxu0 %v1610
    %v1718 = vpop.f32.mrb[0].mxu0
    %v1719 = vadd.f32 0.0, %v1718
    %v1720 = vpop.f32.mrb[0].mxu0
    %v1721 = vpop.f32.mrb[0].mxu0
    %v1722 = vadd.f32 0.0, %v1721
    %v1723 = vpop.f32.mrb[0].mxu0
    %1724 = vmatprep.mubr.bf16.mxu0 0
    %1725 = vmatmul.mubr.bf16.gmra.mrb[0].mxu0 %v1612
    %v1726 = vpop.f32.mrb[0].mxu0
    %v1727 = vadd.f32 0.0, %v1726
    %v1728 = vpop.f32.mrb[0].mxu0
    %v1729 = vpop.f32.mrb[0].mxu0
    %v1730 = vadd.f32 0.0, %v1729
    %v1731 = vpop.f32.mrb[0].mxu0
    %1732 = vmatprep.mubr.bf16.mxu0 0
    %1733 = vmatmul.mubr.bf16.gmra.mrb[0].mxu0 %v1614
    %v1734 = vpop.f32.mrb[0].mxu0
    %v1735 = vadd.f32 0.0, %v1734
    %v1736 = vpop.f32.mrb[0].mxu0
    %v1737 = vpop.f32.mrb[0].mxu0
    %v1738 = vadd.f32 0.0, %v1737
    %v1739 = vpop.f32.mrb[0].mxu0
    %1740 = vdwg.mxu0
    %v1741 = vadd.f32 %v1572, %v1703
    %v1742 = vadd.f32 %v1573, %v1706
    %v1743 = vadd.f32 %v1574, %v1711
    %v1744 = vadd.f32 %v1575, %v1714
    %v1745 = vadd.f32 %v1576, %v1719
    %v1746 = vadd.f32 %v1577, %v1722
    %v1747 = vadd.f32 %v1578, %v1727
    %v1748 = vadd.f32 %v1579, %v1730
    %v1749 = vadd.f32 %v1580, %v1735
    %v1750 = vadd.f32 %v1581, %v1738
    %v1751 = vld [vmem:[%s2] sm:$0x1]
    %v1753 = vlaneseq
    %v1754 = vshrl.u32 %v1753, 7
    %v1755 = vsub.s32 0, %v1754
    %v1756 = vrot.slane %v1751, %v1755
    %v1758 = vmul.f32 %v1741, %v1756
    %v1759 = vmul.f32 %v1742, %v1756
    %v1760 = vmul.f32 %v1743, %v1756
    %v1761 = vmul.f32 %v1744, %v1756
    %v1762 = vmul.f32 %v1745, %v1756
    %v1763 = vmul.f32 %v1746, %v1756
    %v1764 = vmul.f32 %v1747, %v1756
    %v1765 = vmul.f32 %v1748, %v1756
    %v1766 = vmul.f32 %v1749, %v1756
    %v1767 = vmul.f32 %v1750, %v1756
    %v1768 = vld [vmem:[%s3] sm:$0x1]
    %v1770 = vlaneseq
    %v1771 = vshrl.u32 %v1770, 7
    %v1772 = vsub.s32 0, %v1771
    %v1773 = vrot.slane %v1768, %v1772
    %v1775 = vadd.f32 %v1758, %v1773
    %v1776 = vadd.f32 %v1759, %v1773
    %v1777 = vadd.f32 %v1760, %v1773
    %v1778 = vadd.f32 %v1761, %v1773
    %v1779 = vadd.f32 %v1762, %v1773
    %v1780 = vadd.f32 %v1763, %v1773
    %v1781 = vadd.f32 %v1764, %v1773
    %v1782 = vadd.f32 %v1765, %v1773
    %v1783 = vadd.f32 %v1766, %v1773
    %v1784 = vadd.f32 %v1767, %v1773
    %v1785 = vmax.f32 %v1775, 0.0
    %v1786 = vmax.f32 %v1776, 0.0
    %v1787 = vmax.f32 %v1777, 0.0
    %v1788 = vmax.f32 %v1778, 0.0
    %v1789 = vmax.f32 %v1779, 0.0
    %v1790 = vmax.f32 %v1780, 0.0
    %v1791 = vmax.f32 %v1781, 0.0
    %v1792 = vmax.f32 %v1782, 0.0
    %v1793 = vmax.f32 %v1783, 0.0
    %v1794 = vmax.f32 %v1784, 0.0
    %v1795 = vpack.c.bf16 %v1786, %v1785
    %v1796 = vpack.c.bf16 %v1788, %v1787
    %v1797 = vpack.c.bf16 %v1790, %v1789
    %v1798 = vpack.c.bf16 %v1792, %v1791
    %v1799 = vpack.c.bf16 %v1794, %v1793
    %v1805 = vunpack.c.l.b16 %v1795
    %v1806 = vunpack.c.h.b16 %v1795
    %v1807 = vunpack.c.l.b16 %v1796
    %v1808 = vunpack.c.h.b16 %v1796
    %v1809 = vunpack.c.l.b16 %v1797
    %v1810 = vunpack.c.h.b16 %v1797
    %v1811 = vunpack.c.l.b16 %v1798
    %v1812 = vunpack.c.h.b16 %v1798
    %v1813 = vunpack.c.l.b16 %v1799
    %v1814 = vunpack.c.h.b16 %v1799
    %v1815 = vpack.c.b16 %v1805, %v1805
    %v1816 = vpack.c.b16 %v1806, %v1806
    %v1817 = vpack.c.b16 %v1807, %v1807
    %v1818 = vpack.c.b16 %v1808, %v1808
    %v1819 = vpack.c.b16 %v1809, %v1809
    %v1820 = vpack.c.b16 %v1810, %v1810
    %v1821 = vpack.c.b16 %v1811, %v1811
    %v1822 = vpack.c.b16 %v1812, %v1812
    %v1823 = vpack.c.b16 %v1813, %v1813
    %v1824 = vpack.c.b16 %v1814, %v1814
    %1835 = vst [vmem:[#allocation7] sm:$0xf] %v1815
    %1836 = vst [vmem:[#allocation7 + $0x4] sm:$0xf] %v1816
    %1837 = vst [vmem:[#allocation7 + $0x8] sm:$0xf] %v1817
    %1838 = vst [vmem:[#allocation7 + $0xc] sm:$0xf] %v1818
    %1839 = vst [vmem:[#allocation7 + $0x10] sm:$0xf] %v1819
    %1840 = vst [vmem:[#allocation7 + $0x14] sm:$0xf] %v1820
    %1841 = vst [vmem:[#allocation7 + $0x18] sm:$0xf] %v1821
    %1842 = vst [vmem:[#allocation7 + $0x1c] sm:$0xf] %v1822
    %1843 = vst [vmem:[#allocation7 + $0x20] sm:$0xf] %v1823
    %1844 = vst [vmem:[#allocation7 + $0x24] sm:$0xf] %v1824
    // Predicated region
    $region26: #{tpu_custom_call.1} parent=1 // pred_check
      _
    $region27: #{tpu_custom_call.1} parent=1 // pred_check_branch
      %1846 = sbr.rel (0) target = $region29
    $region28: #{tpu_custom_call.1} parent=1 // pred_region
      %s1848 = ssub.s32 640, 640
      %1849 = vsyncadd [#allocation4], %s1848
      %s1850 = sshll.u32 [#allocation7], 4
      %s1851 = int_to_ptr.vmem [resolvable:$true] %s1850
      %1856 = dma.vmem_to_hbm [thread:$0]  %s1851, 640, %s4, [#allocation4], 64, 64, 4
    $region29: #{tpu_custom_call.1} parent=1 // pred_fallthru
      _
    // Predicated region
    $region30: #{tpu_custom_call.1} parent=1 // pred_check
      _
    $region31: #{tpu_custom_call.1} parent=1 // pred_check_branch
      %1858 = sbr.rel (0) target = $region33
    $region32: #{tpu_custom_call.1} parent=1 // pred_region
      %1859 = dma.done [#allocation4], 640
    $region33: #{tpu_custom_call.1} parent=1 // pred_fallthru
      _
    %1860 = vsyncpa [#allocation3], 1
    %1861 = vsyncpa [#allocation6], 1
    %1862 = vsyncpa [#allocation4], 1

</llo_original>
